<compile_context>
chip_gen: v5e
topology: v5e:2x2
jax: 0.10.0
libtpu: 0.0.40
codegen_flags: <defaults>
</compile_context>

<pallas_src>
import functools

import jax
import jax.numpy as jnp
from jax.experimental import pallas as pl
from jax.experimental.pallas import tpu as pltpu


# --------------------------------------------------------------------------------------
# Phase 1: tiled conv (single im2col matmul per row block) + BN sum / sumsq accumulation.
# --------------------------------------------------------------------------------------
def _conv_stats_kernel(a_ref, b1_ref, b2_ref, w_ref, conv_ref, stats_ref,
                       win_ref, col_ref):
    # a_ref:    (1, TH, Wp, Cp)   TH padded-input rows of this block's halo window
    # b1_ref:   (1, 1,  Wp, Cp)   halo row TH
    # b2_ref:   (1, 1,  Wp, Cp)   halo row TH+1
    # w_ref:    (9*Cp, Coutp)     conv weight, rows ordered (kh, kw, cin)
    # conv_ref: (TM, Coutp)       f32 conv output rows for this block
    # stats_ref:(1, 8, Coutp)     f32; row 0 = sum, row 1 = sumsq (per batch image)
    # win_ref:  (TH+2, Wp, Cp)    VMEM scratch: assembled halo window
    # col_ref:  (TM, 9*Cp)        VMEM scratch: im2col tile (lane-aligned taps)
    TH = a_ref.shape[1]
    Wp = a_ref.shape[2]
    Cp = a_ref.shape[3]
    W = Wp - 2
    TM = TH * W

    # Assemble the (TH+2)-row halo window for this block in VMEM.
    win_ref[0:TH] = a_ref[0]
    win_ref[TH:TH + 1] = b1_ref[0]
    win_ref[TH + 1:TH + 2] = b2_ref[0]

    # im2col: build one (TM, 9*Cp) tile; tap columns are 128-lane aligned (Cp % 128 == 0).
    for kh in range(3):
        for kw in range(3):
            tap = kh * 3 + kw
            patch = win_ref[kh:kh + TH, kw:kw + W, :]          # (TH, W, Cp)
            col_ref[:, tap * Cp:(tap + 1) * Cp] = patch.reshape(TM, Cp)

    # Single K = 9*Cp contraction on the MXU, f32 accumulation.
    acc = jnp.dot(col_ref[...], w_ref[...], preferred_element_type=jnp.float32)
    conv_ref[...] = acc

    # One-pass BN statistics, accumulated across the H-row-block ("arbitrary") axis.
    @pl.when(pl.program_id(1) == 0)
    def _():
        stats_ref[...] = jnp.zeros_like(stats_ref)

    stats_ref[0, 0:1, :] = stats_ref[0, 0:1, :] + jnp.sum(acc, axis=0, keepdims=True)
    stats_ref[0, 1:2, :] = stats_ref[0, 1:2, :] + jnp.sum(acc * acc, axis=0, keepdims=True)


# --------------------------------------------------------------------------------------
# Phase 2: global-batch-stat BatchNorm + LeakyReLU over lane-dense row blocks.
# --------------------------------------------------------------------------------------
def _bn_act_kernel(conv_ref, stats_ref, gamma_ref, beta_ref, o_ref, *, count, eps, slope):
    # conv_ref:  (TM2, Coutp) f32 conv rows
    # stats_ref: (N, 8, Coutp) per-image partial sums (row 0 = sum, row 1 = sumsq)
    # gamma_ref/beta_ref: (1, Coutp)
    st = jnp.sum(stats_ref[...], axis=0)                 # (8, Coutp)
    mean = st[0:1, :] * (1.0 / count)                    # (1, Coutp)
    var = st[1:2, :] * (1.0 / count) - mean * mean       # biased batch variance
    var = jnp.maximum(var, 0.0)
    rstd = jax.lax.rsqrt(var + eps)
    scale = gamma_ref[...] * rstd
    shift = beta_ref[...] - mean * scale
    y = conv_ref[...] * scale + shift
    o_ref[...] = jnp.where(y > 0.0, y, slope * y)


# --------------------------------------------------------------------------------------
# Wrapper.
# --------------------------------------------------------------------------------------
def _round_up(x, m):
    return ((x + m - 1) // m) * m


def _pick_h_tile(H, W, target_rows):
    """Largest divisor TH of H with TH*W <= target_rows and TH*W a multiple of 8."""
    cands = [d for d in range(H, 0, -1)
             if H % d == 0 and d * W <= target_rows and (d * W) % 8 == 0]
    if not cands:
        cands = [d for d in range(H, 0, -1) if H % d == 0 and d * W <= target_rows] or [H]
    return cands[0]


def _pick_row_tile(total_rows, target_rows):
    """Largest divisor of total_rows that is <= target_rows and a multiple of 8."""
    cands = [d for d in range(min(total_rows, target_rows), 0, -1)
             if total_rows % d == 0 and d % 8 == 0]
    return cands[0] if cands else total_rows


def conv_block2(x_nchw, weight, gamma, beta, *,
                compute_dtype=jnp.bfloat16,
                conv_block_rows=512, bn_block_rows=1024):
    """Conv2d(3x3,s1,p1,bias=False) -> BatchNorm2d(batch stats) -> LeakyReLU(0.01).

    x_nchw: (N, Cin, H, W); weight: (Cout, Cin, 3, 3); gamma/beta: (Cout,).
    Returns (N, Cout, H, W) float32.
    """
    N, Cin, H, W = x_nchw.shape
    Cout = weight.shape[0]
    Wp = W + 2

    Cp = _round_up(Cin, 128)        # lane-dense input channels
    Coutp = _round_up(Cout, 128)    # lane-dense output channels

    TH = _pick_h_tile(H, W, conv_block_rows)
    num_hb = H // TH
    TM = TH * W
    NHW = N * H * W
    TM2 = _pick_row_tile(NHW, bn_block_rows)

    # Layout glue: NCHW -> NHWC, zero spatial pad by 1, pad channels to 128 lanes.
    x = jnp.transpose(x_nchw, (0, 2, 3, 1)).astype(compute_dtype)
    x = jnp.pad(x, ((0, 0), (1, 1), (1, 1), (0, Cp - Cin)))
    # (Cout, Cin, kh, kw) -> (kh, kw, cin, cout) -> pad channels -> (9*Cp, Coutp).
    w = jnp.transpose(weight, (2, 3, 1, 0))
    w = jnp.pad(w, ((0, 0), (0, 0), (0, Cp - Cin), (0, Coutp - Cout)))
    w = w.reshape(9 * Cp, Coutp).astype(compute_dtype)
    g = jnp.pad(gamma.astype(jnp.float32), (0, Coutp - Cout)).reshape(1, Coutp)
    b = jnp.pad(beta.astype(jnp.float32), (0, Coutp - Cout)).reshape(1, Coutp)

    # ---- phase 1: tiled conv + per-image sum/sumsq accumulation --------------------
    conv_flat, stats = pl.pallas_call(
        _conv_stats_kernel,
        out_shape=(jax.ShapeDtypeStruct((NHW, Coutp), jnp.float32),
                   jax.ShapeDtypeStruct((N, 8, Coutp), jnp.float32)),
        grid_spec=pltpu.PrefetchScalarGridSpec(
            num_scalar_prefetch=0,
            grid=(N, num_hb),
            in_specs=[
                # TH-row body of the halo window + its two trailing halo rows.
                pl.BlockSpec((1, TH, Wp, Cp), lambda n, hb: (n, hb, 0, 0)),
                pl.BlockSpec((1, 1, Wp, Cp), lambda n, hb: (n, hb * TH + TH, 0, 0)),
                pl.BlockSpec((1, 1, Wp, Cp), lambda n, hb: (n, hb * TH + TH + 1, 0, 0)),
                pl.BlockSpec((9 * Cp, Coutp), lambda n, hb: (0, 0)),
            ],
            out_specs=(
                pl.BlockSpec((TM, Coutp), lambda n, hb: (n * num_hb + hb, 0)),
                pl.BlockSpec((1, 8, Coutp), lambda n, hb: (n, 0, 0)),
            ),
            scratch_shapes=[
                pltpu.VMEM((TH + 2, Wp, Cp), compute_dtype),   # halo window
                pltpu.VMEM((TM, 9 * Cp), compute_dtype),       # im2col tile
            ],
        ),
        compiler_params=pltpu.CompilerParams(
            dimension_semantics=("parallel", "arbitrary"),
            vmem_limit_bytes=32 * 1024 * 1024),
    )(x, x, x, w)

    # ---- phase 2: global-batch BN + LeakyReLU over lane-dense row blocks ----------
    out_flat = pl.pallas_call(
        functools.partial(_bn_act_kernel, count=float(NHW), eps=1e-5, slope=0.01),
        out_shape=jax.ShapeDtypeStruct((NHW, Coutp), jnp.float32),
        grid_spec=pltpu.PrefetchScalarGridSpec(
            num_scalar_prefetch=0,
            grid=(NHW // TM2,),
            in_specs=[
                pl.BlockSpec((TM2, Coutp), lambda i: (i, 0)),
                pl.BlockSpec((N, 8, Coutp), lambda i: (0, 0, 0)),
                pl.BlockSpec((1, Coutp), lambda i: (0, 0)),
                pl.BlockSpec((1, Coutp), lambda i: (0, 0)),
            ],
            out_specs=pl.BlockSpec((TM2, Coutp), lambda i: (i, 0)),
        ),
        compiler_params=pltpu.CompilerParams(
            dimension_semantics=("parallel",),
            vmem_limit_bytes=32 * 1024 * 1024),
    )(conv_flat, stats, g, b)

    out = out_flat.reshape(N, H, W, Coutp)[..., :Cout]
    return jnp.transpose(out, (0, 3, 1, 2)).astype(jnp.float32)


# --------------------------------------------------------------------------------------
# Pure-JAX reference mirroring the PyTorch module (training-mode BN, f32).
# --------------------------------------------------------------------------------------
def _reference(x_nchw, weight, gamma, beta):
    conv = jax.lax.conv_general_dilated(
        x_nchw.astype(jnp.float32), weight.astype(jnp.float32),
        window_strides=(1, 1), padding=((1, 1), (1, 1)),
        dimension_numbers=("NCHW", "OIHW", "NCHW"))
    mean = jnp.mean(conv, axis=(0, 2, 3), keepdims=True)
    var = jnp.mean((conv - mean) ** 2, axis=(0, 2, 3), keepdims=True)
    xhat = (conv - mean) * jax.lax.rsqrt(var + 1e-5)
    y = xhat * gamma.reshape(1, -1, 1, 1) + beta.reshape(1, -1, 1, 1)
    return jnp.where(y > 0, y, 0.01 * y)


if __name__ == "__main__":
    key = jax.random.PRNGKey(0)
    k_x, k_w, k_g, k_b = jax.random.split(key, 4)

    N, Cin, Cout, H, W = 2, 4, 8, 16, 16
    x = jax.random.normal(k_x, (N, Cin, H, W), dtype=jnp.float32)
    weight = 0.1 * jax.random.normal(k_w, (Cout, Cin, 3, 3), dtype=jnp.float32)
    gamma = 1.0 + 0.1 * jax.random.normal(k_g, (Cout,), dtype=jnp.float32)
    beta = 0.1 * jax.random.normal(k_b, (Cout,), dtype=jnp.float32)

    ref = jax.block_until_ready(_reference(x, weight, gamma, beta))

    # Small block targets so the test exercises multi-block tiling + stats accumulation
    # (phase-1 grid = (2, 2), phase-2 grid = (2,)).
    # f32 MXU operands: exact-precision path, tight tolerance.
    out_f32 = jax.block_until_ready(
        conv_block2(x, weight, gamma, beta, compute_dtype=jnp.float32,
                    conv_block_rows=128, bn_block_rows=256))
    assert out_f32.shape == (N, Cout, H, W)
    assert jnp.allclose(out_f32, ref, atol=1e-4, rtol=1e-4), "f32 path mismatch vs JAX reference"

    # bf16 MXU operands with f32 accumulation (peak MXU throughput on v6e/v7x):
    # tolerance loosened to account for bf16 operand rounding.
    out_bf16 = jax.block_until_ready(
        conv_block2(x, weight, gamma, beta, compute_dtype=jnp.bfloat16,
                    conv_block_rows=128, bn_block_rows=256))
    assert jnp.allclose(out_bf16, ref, atol=7.5e-2, rtol=7.5e-2), "bf16 path mismatch vs JAX reference"

    print("KERNEL_OK")
</pallas_src>

<mosaic_0001>
module attributes {stable_mosaic.version = 11 : i64} {
  func.func @_conv_stats_kernel(%arg0: i32, %arg1: i32, %arg2: memref<1x8x18x128xf32, #tpu.memory_space<vmem>>, %arg3: memref<1x1x18x128xf32, #tpu.memory_space<vmem>>, %arg4: memref<1x1x18x128xf32, #tpu.memory_space<vmem>>, %arg5: memref<1152x128xf32, #tpu.memory_space<vmem>>, %arg6: memref<128x128xf32, #tpu.memory_space<vmem>>, %arg7: memref<1x8x128xf32, #tpu.memory_space<vmem>>, %arg8: memref<10x18x128xf32, #tpu.memory_space<vmem>>, %arg9: memref<128x1152xf32, #tpu.memory_space<vmem>>) attributes {dimension_semantics = [#tpu.dimension_semantics<parallel>, #tpu.dimension_semantics<arbitrary>], iteration_bounds = array<i64: 2, 2>, scalar_prefetch = 0 : i64, scratch_operands = 2 : i64, tpu.core_type = #tpu.core_type<tc>, window_params = [{transform_indices = @transform_0, window_bounds = array<i64: 1, 8, 18, 128>}, {transform_indices = @transform_1, window_bounds = array<i64: 1, 1, 18, 128>}, {transform_indices = @transform_2, window_bounds = array<i64: 1, 1, 18, 128>}, {pipeline_mode = #tpu.pipeline_mode<synchronous>, transform_indices = @transform_3, window_bounds = array<i64: 1152, 128>}, {transform_indices = @transform_4, window_bounds = array<i64: 128, 128>}, {transform_indices = @transform_5, window_bounds = array<i64: 1, 8, 128>}]} {
    %c0 = arith.constant 0 : index
    %c0_0 = arith.constant 0 : index
    %c0_1 = arith.constant 0 : index
    %c0_2 = arith.constant 0 : index
    %0 = vector.load %arg2[%c0, %c0_0, %c0_1, %c0_2] : memref<1x8x18x128xf32, #tpu.memory_space<vmem>>, vector<1x8x18x128xf32>
    %1 = vector.shape_cast %0 : vector<1x8x18x128xf32> to vector<8x18x128xf32>
    %c0_3 = arith.constant 0 : index
    %c0_4 = arith.constant 0 : index
    %c0_5 = arith.constant 0 : index
    %2 = vector.load %arg8[%c0_3, %c0_4, %c0_5] : memref<10x18x128xf32, #tpu.memory_space<vmem>>, vector<8x18x128xf32>
    tpu.vector_store %arg8[%c0_3, %c0_4, %c0_5], %1 {strides = array<i32>} : memref<10x18x128xf32, #tpu.memory_space<vmem>>, vector<8x18x128xf32>,
    %c0_6 = arith.constant 0 : index
    %c0_7 = arith.constant 0 : index
    %c0_8 = arith.constant 0 : index
    %c0_9 = arith.constant 0 : index
    %3 = vector.load %arg3[%c0_6, %c0_7, %c0_8, %c0_9] : memref<1x1x18x128xf32, #tpu.memory_space<vmem>>, vector<1x1x18x128xf32>
    %4 = vector.shape_cast %3 : vector<1x1x18x128xf32> to vector<1x18x128xf32>
    %c8 = arith.constant 8 : index
    %c0_10 = arith.constant 0 : index
    %c0_11 = arith.constant 0 : index
    %5 = vector.load %arg8[%c8, %c0_10, %c0_11] : memref<10x18x128xf32, #tpu.memory_space<vmem>>, vector<1x18x128xf32>
    tpu.vector_store %arg8[%c8, %c0_10, %c0_11], %4 {strides = array<i32>} : memref<10x18x128xf32, #tpu.memory_space<vmem>>, vector<1x18x128xf32>,
    %c0_12 = arith.constant 0 : index
    %c0_13 = arith.constant 0 : index
    %c0_14 = arith.constant 0 : index
    %c0_15 = arith.constant 0 : index
    %6 = vector.load %arg4[%c0_12, %c0_13, %c0_14, %c0_15] : memref<1x1x18x128xf32, #tpu.memory_space<vmem>>, vector<1x1x18x128xf32>
    %7 = vector.shape_cast %6 : vector<1x1x18x128xf32> to vector<1x18x128xf32>
    %c9 = arith.constant 9 : index
    %c0_16 = arith.constant 0 : index
    %c0_17 = arith.constant 0 : index
    %8 = vector.load %arg8[%c9, %c0_16, %c0_17] : memref<10x18x128xf32, #tpu.memory_space<vmem>>, vector<1x18x128xf32>
    tpu.vector_store %arg8[%c9, %c0_16, %c0_17], %7 {strides = array<i32>} : memref<10x18x128xf32, #tpu.memory_space<vmem>>, vector<1x18x128xf32>,
    %c0_18 = arith.constant 0 : index
    %c0_19 = arith.constant 0 : index
    %c0_20 = arith.constant 0 : index
    %9 = vector.load %arg8[%c0_18, %c0_19, %c0_20] : memref<10x18x128xf32, #tpu.memory_space<vmem>>, vector<8x16x128xf32>
    %10 = vector.shape_cast %9 : vector<8x16x128xf32> to vector<128x128xf32>
    %c0_21 = arith.constant 0 : index
    %c0_22 = arith.constant 0 : index
    %11 = vector.load %arg9[%c0_21, %c0_22] : memref<128x1152xf32, #tpu.memory_space<vmem>>, vector<128x128xf32>
    tpu.vector_store %arg9[%c0_21, %c0_22], %10 {strides = array<i32>} : memref<128x1152xf32, #tpu.memory_space<vmem>>, vector<128x128xf32>,
    %c0_23 = arith.constant 0 : index
    %c1 = arith.constant 1 : index
    %c0_24 = arith.constant 0 : index
    %12 = vector.load %arg8[%c0_23, %c1, %c0_24] : memref<10x18x128xf32, #tpu.memory_space<vmem>>, vector<8x16x128xf32>
    %13 = vector.shape_cast %12 : vector<8x16x128xf32> to vector<128x128xf32>
    %c0_25 = arith.constant 0 : index
    %c128 = arith.constant 128 : index
    %14 = vector.load %arg9[%c0_25, %c128] : memref<128x1152xf32, #tpu.memory_space<vmem>>, vector<128x128xf32>
    tpu.vector_store %arg9[%c0_25, %c128], %13 {strides = array<i32>} : memref<128x1152xf32, #tpu.memory_space<vmem>>, vector<128x128xf32>,
    %c0_26 = arith.constant 0 : index
    %c2 = arith.constant 2 : index
    %c0_27 = arith.constant 0 : index
    %15 = vector.load %arg8[%c0_26, %c2, %c0_27] : memref<10x18x128xf32, #tpu.memory_space<vmem>>, vector<8x16x128xf32>
    %16 = vector.shape_cast %15 : vector<8x16x128xf32> to vector<128x128xf32>
    %c0_28 = arith.constant 0 : index
    %c256 = arith.constant 256 : index
    %17 = vector.load %arg9[%c0_28, %c256] : memref<128x1152xf32, #tpu.memory_space<vmem>>, vector<128x128xf32>
    tpu.vector_store %arg9[%c0_28, %c256], %16 {strides = array<i32>} : memref<128x1152xf32, #tpu.memory_space<vmem>>, vector<128x128xf32>,
    %c1_29 = arith.constant 1 : index
    %c0_30 = arith.constant 0 : index
    %c0_31 = arith.constant 0 : index
    %18 = vector.load %arg8[%c1_29, %c0_30, %c0_31] : memref<10x18x128xf32, #tpu.memory_space<vmem>>, vector<8x16x128xf32>
    %19 = vector.shape_cast %18 : vector<8x16x128xf32> to vector<128x128xf32>
    %c0_32 = arith.constant 0 : index
    %c384 = arith.constant 384 : index
    %20 = vector.load %arg9[%c0_32, %c384] : memref<128x1152xf32, #tpu.memory_space<vmem>>, vector<128x128xf32>
    tpu.vector_store %arg9[%c0_32, %c384], %19 {strides = array<i32>} : memref<128x1152xf32, #tpu.memory_space<vmem>>, vector<128x128xf32>,
    %c1_33 = arith.constant 1 : index
    %c1_34 = arith.constant 1 : index
    %c0_35 = arith.constant 0 : index
    %21 = vector.load %arg8[%c1_33, %c1_34, %c0_35] : memref<10x18x128xf32, #tpu.memory_space<vmem>>, vector<8x16x128xf32>
    %22 = vector.shape_cast %21 : vector<8x16x128xf32> to vector<128x128xf32>
    %c0_36 = arith.constant 0 : index
    %c512 = arith.constant 512 : index
    %23 = vector.load %arg9[%c0_36, %c512] : memref<128x1152xf32, #tpu.memory_space<vmem>>, vector<128x128xf32>
    tpu.vector_store %arg9[%c0_36, %c512], %22 {strides = array<i32>} : memref<128x1152xf32, #tpu.memory_space<vmem>>, vector<128x128xf32>,
    %c1_37 = arith.constant 1 : index
    %c2_38 = arith.constant 2 : index
    %c0_39 = arith.constant 0 : index
    %24 = vector.load %arg8[%c1_37, %c2_38, %c0_39] : memref<10x18x128xf32, #tpu.memory_space<vmem>>, vector<8x16x128xf32>
    %25 = vector.shape_cast %24 : vector<8x16x128xf32> to vector<128x128xf32>
    %c0_40 = arith.constant 0 : index
    %c640 = arith.constant 640 : index
    %26 = vector.load %arg9[%c0_40, %c640] : memref<128x1152xf32, #tpu.memory_space<vmem>>, vector<128x128xf32>
    tpu.vector_store %arg9[%c0_40, %c640], %25 {strides = array<i32>} : memref<128x1152xf32, #tpu.memory_space<vmem>>, vector<128x128xf32>,
    %c2_41 = arith.constant 2 : index
    %c0_42 = arith.constant 0 : index
    %c0_43 = arith.constant 0 : index
    %27 = vector.load %arg8[%c2_41, %c0_42, %c0_43] : memref<10x18x128xf32, #tpu.memory_space<vmem>>, vector<8x16x128xf32>
    %28 = vector.shape_cast %27 : vector<8x16x128xf32> to vector<128x128xf32>
    %c0_44 = arith.constant 0 : index
    %c768 = arith.constant 768 : index
    %29 = vector.load %arg9[%c0_44, %c768] : memref<128x1152xf32, #tpu.memory_space<vmem>>, vector<128x128xf32>
    tpu.vector_store %arg9[%c0_44, %c768], %28 {strides = array<i32>} : memref<128x1152xf32, #tpu.memory_space<vmem>>, vector<128x128xf32>,
    %c2_45 = arith.constant 2 : index
    %c1_46 = arith.constant 1 : index
    %c0_47 = arith.constant 0 : index
    %30 = vector.load %arg8[%c2_45, %c1_46, %c0_47] : memref<10x18x128xf32, #tpu.memory_space<vmem>>, vector<8x16x128xf32>
    %31 = vector.shape_cast %30 : vector<8x16x128xf32> to vector<128x128xf32>
    %c0_48 = arith.constant 0 : index
    %c896 = arith.constant 896 : index
    %32 = vector.load %arg9[%c0_48, %c896] : memref<128x1152xf32, #tpu.memory_space<vmem>>, vector<128x128xf32>
    tpu.vector_store %arg9[%c0_48, %c896], %31 {strides = array<i32>} : memref<128x1152xf32, #tpu.memory_space<vmem>>, vector<128x128xf32>,
    %c2_49 = arith.constant 2 : index
    %c2_50 = arith.constant 2 : index
    %c0_51 = arith.constant 0 : index
    %33 = vector.load %arg8[%c2_49, %c2_50, %c0_51] : memref<10x18x128xf32, #tpu.memory_space<vmem>>, vector<8x16x128xf32>
    %34 = vector.shape_cast %33 : vector<8x16x128xf32> to vector<128x128xf32>
    %c0_52 = arith.constant 0 : index
    %c1024 = arith.constant 1024 : index
    %35 = vector.load %arg9[%c0_52, %c1024] : memref<128x1152xf32, #tpu.memory_space<vmem>>, vector<128x128xf32>
    tpu.vector_store %arg9[%c0_52, %c1024], %34 {strides = array<i32>} : memref<128x1152xf32, #tpu.memory_space<vmem>>, vector<128x128xf32>,
    %c0_53 = arith.constant 0 : index
    %c0_54 = arith.constant 0 : index
    %36 = vector.load %arg9[%c0_53, %c0_54] : memref<128x1152xf32, #tpu.memory_space<vmem>>, vector<128x1152xf32>
    %c0_55 = arith.constant 0 : index
    %c0_56 = arith.constant 0 : index
    %37 = vector.load %arg5[%c0_55, %c0_56] : memref<1152x128xf32, #tpu.memory_space<vmem>>, vector<1152x128xf32>
    %cst = arith.constant dense<0.000000e+00> : vector<128x128xf32>
    %38 = tpu.matmul %36, %37, %cst {dimension_numbers = #tpu.dot_dimension_numbers<[1], [0], [0], [1], [0, 0, 1, 1], [], []>} : vector<128x1152xf32>, vector<1152x128xf32>, vector<128x128xf32> -> vector<128x128xf32>
    %c0_57 = arith.constant 0 : index
    %c0_58 = arith.constant 0 : index
    %39 = vector.load %arg6[%c0_57, %c0_58] : memref<128x128xf32, #tpu.memory_space<vmem>>, vector<128x128xf32>
    tpu.vector_store %arg6[%c0_57, %c0_58], %38 {strides = array<i32>} : memref<128x128xf32, #tpu.memory_space<vmem>>, vector<128x128xf32>,
    %c0_i32 = arith.constant 0 : i32
    %40 = arith.cmpi eq, %arg1, %c0_i32 : i32
    %41 = arith.extui %40 : i1 to i32
    %c0_i32_59 = arith.constant 0 : i32
    %42 = arith.cmpi ne, %41, %c0_i32_59 : i32
    scf.if %42 {
      %cst_74 = arith.constant 0.000000e+00 : f32
      %60 = vector.broadcast %cst_74 : f32 to vector<1x8x128xf32>
      %c0_75 = arith.constant 0 : index
      %c0_76 = arith.constant 0 : index
      %c0_77 = arith.constant 0 : index
      %61 = vector.load %arg7[%c0_75, %c0_76, %c0_77] : memref<1x8x128xf32, #tpu.memory_space<vmem>>, vector<1x8x128xf32>
      tpu.vector_store %arg7[%c0_75, %c0_76, %c0_77], %60 {strides = array<i32>} : memref<1x8x128xf32, #tpu.memory_space<vmem>>, vector<1x8x128xf32>,
    } else {
    }
    %c0_60 = arith.constant 0 : index
    %c0_61 = arith.constant 0 : index
    %c0_62 = arith.constant 0 : index
    %43 = vector.load %arg7[%c0_60, %c0_61, %c0_62] : memref<1x8x128xf32, #tpu.memory_space<vmem>>, vector<1x1x128xf32>
    %44 = vector.shape_cast %43 : vector<1x1x128xf32> to vector<1x128xf32>
    %cst_63 = arith.constant dense<0.000000e+00> : vector<128xf32>
    %45 = vector.multi_reduction <add>, %38, %cst_63 [0] : vector<128x128xf32> to vector<128xf32>
    %46 = vector.shape_cast %45 : vector<128xf32> to vector<1x128xf32>
    %47 = arith.addf %44, %46 : vector<1x128xf32>
    %c0_64 = arith.constant 0 : index
    %c0_65 = arith.constant 0 : index
    %c0_66 = arith.constant 0 : index
    %48 = vector.load %arg7[%c0_64, %c0_65, %c0_66] : memref<1x8x128xf32, #tpu.memory_space<vmem>>, vector<1x1x128xf32>
    %49 = vector.shape_cast %48 : vector<1x1x128xf32> to vector<1x128xf32>
    %50 = vector.shape_cast %47 : vector<1x128xf32> to vector<1x1x128xf32>
    tpu.vector_store %arg7[%c0_64, %c0_65, %c0_66], %50 {strides = array<i32>} : memref<1x8x128xf32, #tpu.memory_space<vmem>>, vector<1x1x128xf32>,
    %c0_67 = arith.constant 0 : index
    %c1_68 = arith.constant 1 : index
    %c0_69 = arith.constant 0 : index
    %51 = vector.load %arg7[%c0_67, %c1_68, %c0_69] : memref<1x8x128xf32, #tpu.memory_space<vmem>>, vector<1x1x128xf32>
    %52 = vector.shape_cast %51 : vector<1x1x128xf32> to vector<1x128xf32>
    %53 = arith.mulf %38, %38 : vector<128x128xf32>
    %cst_70 = arith.constant dense<0.000000e+00> : vector<128xf32>
    %54 = vector.multi_reduction <add>, %53, %cst_70 [0] : vector<128x128xf32> to vector<128xf32>
    %55 = vector.shape_cast %54 : vector<128xf32> to vector<1x128xf32>
    %56 = arith.addf %52, %55 : vector<1x128xf32>
    %c0_71 = arith.constant 0 : index
    %c1_72 = arith.constant 1 : index
    %c0_73 = arith.constant 0 : index
    %57 = vector.load %arg7[%c0_71, %c1_72, %c0_73] : memref<1x8x128xf32, #tpu.memory_space<vmem>>, vector<1x1x128xf32>
    %58 = vector.shape_cast %57 : vector<1x1x128xf32> to vector<1x128xf32>
    %59 = vector.shape_cast %56 : vector<1x128xf32> to vector<1x1x128xf32>
    tpu.vector_store %arg7[%c0_71, %c1_72, %c0_73], %59 {strides = array<i32>} : memref<1x8x128xf32, #tpu.memory_space<vmem>>, vector<1x1x128xf32>,
    return
  }
  func.func @transform_0(%arg0: i32, %arg1: i32) -> (i32, i32, i32, i32) {
    %c0_i32 = arith.constant 0 : i32
    %c0_i32_0 = arith.constant 0 : i32
    %c0_i32_1 = arith.constant 0 : i32
    return %arg0, %arg1, %c0_i32, %c0_i32_0 : i32, i32, i32, i32
  }
  func.func @transform_1(%arg0: i32, %arg1: i32) -> (i32, i32, i32, i32) {
    %c8_i32 = arith.constant 8 : i32
    %0 = arith.muli %arg1, %c8_i32 : i32
    %c8_i32_0 = arith.constant 8 : i32
    %1 = arith.addi %0, %c8_i32_0 : i32
    %c0_i32 = arith.constant 0 : i32
    %c0_i32_1 = arith.constant 0 : i32
    %c0_i32_2 = arith.constant 0 : i32
    return %arg0, %1, %c0_i32, %c0_i32_1 : i32, i32, i32, i32
  }
  func.func @transform_2(%arg0: i32, %arg1: i32) -> (i32, i32, i32, i32) {
    %c8_i32 = arith.constant 8 : i32
    %0 = arith.muli %arg1, %c8_i32 : i32
    %c8_i32_0 = arith.constant 8 : i32
    %1 = arith.addi %0, %c8_i32_0 : i32
    %c1_i32 = arith.constant 1 : i32
    %2 = arith.addi %1, %c1_i32 : i32
    %c0_i32 = arith.constant 0 : i32
    %c0_i32_1 = arith.constant 0 : i32
    %c0_i32_2 = arith.constant 0 : i32
    return %arg0, %2, %c0_i32, %c0_i32_1 : i32, i32, i32, i32
  }
  func.func @transform_3(%arg0: i32, %arg1: i32) -> (i32, i32) {
    %c0_i32 = arith.constant 0 : i32
    %c0_i32_0 = arith.constant 0 : i32
    %c0_i32_1 = arith.constant 0 : i32
    return %c0_i32, %c0_i32_0 : i32, i32
  }
  func.func @transform_4(%arg0: i32, %arg1: i32) -> (i32, i32) {
    %c2_i32 = arith.constant 2 : i32
    %0 = arith.muli %arg0, %c2_i32 : i32
    %1 = arith.addi %0, %arg1 : i32
    %c0_i32 = arith.constant 0 : i32
    %c0_i32_0 = arith.constant 0 : i32
    return %1, %c0_i32 : i32, i32
  }
  func.func @transform_5(%arg0: i32, %arg1: i32) -> (i32, i32, i32) {
    %c0_i32 = arith.constant 0 : i32
    %c0_i32_0 = arith.constant 0 : i32
    %c0_i32_1 = arith.constant 0 : i32
    return %arg0, %c0_i32, %c0_i32_0 : i32, i32, i32
  }
}

</mosaic_0001>

<llo_original>
// kernel: tpu_custom_call.1
$region0: #{tpu_custom_call.1}
  #allocation0 [shape = 'u32[]', space=smem, size = 0x4, offset = 0x4, fixed_abs, tag = 'smem constant byte address 0x4 - core index']
  #allocation1 [shape = 'u32[72,128]{1,0:T(1,128)}', space=vmem, size = 0x9000, scoped, tag = 'internal scratch']
  #allocation2 [shape = 'f32[10,18,128]{2,1,0:T(8,128)}', space=vmem, size = 0x1e000, scoped, tag = 'scratch operand']
  #allocation3 [shape = 'f32[128,1152]{1,0:T(8,128)}', space=vmem, size = 0x90000, scoped, tag = 'scratch operand']
  %s0 = inlined_call_operand.vmem [shape: f32[2,18,18,128], index: 0, kind: input, shape index: {}]
  %s1 = inlined_call_operand.vmem [shape: f32[2,18,18,128], index: 1, kind: input, shape index: {}]
  %s2 = inlined_call_operand.vmem [shape: f32[2,18,18,128], index: 2, kind: input, shape index: {}]
  %s3 = inlined_call_operand.vmem [shape: f32[1152,128], index: 3, kind: input, shape index: {}]
  %s4 = inlined_call_operand.hbm [shape: f32[512,128], index: 4, kind: output, shape index: {0}]
  %s5 = inlined_call_operand.hbm [shape: f32[2,8,128], index: 5, kind: output, shape index: {1}]
  %6 = xla_tuple %s4, %s5
  %s7 = sld [smem:[#allocation0]]
  $region61: #{tpu_custom_call.1} parent=0
    _
  %s9 = ssub.s32 1, %s7
  %s10 = scalar_select 0, %s9, %s7
  $region1: #{tpu_custom_call.1} parent=0
    #allocation4 [shape = 'u8[131072]{0}', space=vmem, size = 0x20000, scoped, tag = 'output window, operand 0']
    #allocation5 [shape = 's32[2]{0}', space=sflag, size = 0x8, scoped, tag = 'scoped memory for tpu_custom_call.1']
    #allocation6 [shape = 'u8[8192]{0}', space=vmem, size = 0x2000, scoped, tag = 'output window, operand 1']
    #allocation7 [shape = 's32[2]{0}', space=sflag, size = 0x8, scoped, tag = 'scoped memory for tpu_custom_call.1']
    %11 = vsyncpa [#allocation5], 0
    %s12 = scalar_lea.sflag [#allocation5], 1
    %13 = vsyncpa %s12, 0
    %14 = vsyncpa [#allocation7], 0
    %s15 = scalar_lea.sflag [#allocation7], 1
    %16 = vsyncpa %s15, 0
    loop: start=0, step=1, limit=6
    $region2: #{tpu_custom_call.1} parent=1 // loop_pre_header
      _
    $region3: #{tpu_custom_call.1} parent=1 // loop_header
      %s18 = sphi 0, %s22
      %p19 = scmp.ge.s32.totalorder %s18, 6
      %s25 = sphi 0, %s37
      %s26 = sphi 0, %s33
      %s27 = sphi 0, %s25
      %s28 = sphi 0, %s26
      %s29 = sphi 0, %s27
      %s30 = sphi 0, %s28
      %s42 = sphi 0, %s44
      %s45 = sphi 0, %s42
      %s46 = sphi 0, %s45
      %s62 = sphi 0, %s46
      %s74 = sphi 0, %s76
      %s77 = sphi 0, %s74
      %s78 = sphi 0, %s77
      %s94 = sphi 0, %s78
      %s106 = sphi 0, %s108
      %s109 = sphi 0, %s106
      %s110 = sphi 0, %s109
      %s126 = sphi 0, %s110
      %s130 = sphi 0, %s130
      %s132 = sphi 0, %s130
      %s133 = sphi 0, %s132
      %s147 = sphi 0, %s133
      %s157 = sphi 0, %s159
      %s160 = sphi 0, %s157
      %s161 = sphi 0, %s160
      %s177 = sphi 0, %s161
      %s183 = sphi 0, %s185
      %s186 = sphi 0, %s183
      %s187 = sphi 0, %s186
      %s203 = sphi 0, %s187
    $region4: #{tpu_custom_call.1} parent=1 // loop_header_branch
      %21 = sbr.rel (%p19) target = $region8
    $region5: #{tpu_custom_call.1} parent=1 // loop_body
      %s23 = ssub.s32 %s18, 1
      %s24 = ssub.s32 %s18, 2
      %s31 = sadd.s32 1, %s26
      %p32 = scmp.ge.s32.totalorder %s31, 2
      %s33 = scalar_select %p32, 0, %s31
      %s34 = sadd.s32 1, %s25
      %s35 = scalar_select %p32, %s34, %s25
      %p36 = scmp.ge.s32.totalorder %s35, 2
      %s37 = scalar_select %p36, 0, %s35
      %s38 = ssub.s32 %s25, %s37
      %s39 = ssub.s32 %s26, %s33
      %s40 = sor.u32 %s38, %s39
      %p41 = scmp.eq.s32.totalorder %s40, 0
      %s43 = sadd.s32 %s42, 1
      %s44 = scalar_select %p41, %s42, %s43
      %p47 = pneg %p41
      %p48 = scmp.eq.s32.totalorder %s18, 3
      %p49 = por %p47, %p48
      %p50 = scmp.ne.s32.totalorder %s42, %s45
      %p51 = scmp.eq.s32.totalorder %s18, 0
      %p52 = por %p50, %p51
      %p53 = scmp.ne.s32.totalorder %s42, %s45
      %p54 = scmp.eq.s32.totalorder %s23, 3
      %p55 = por %p53, %p54
      %p56 = scmp.ne.s32.totalorder %s45, %s46
      %p57 = scmp.eq.s32.totalorder %s23, 0
      %p58 = por %p56, %p57
      %p59 = scmp.ne.s32.totalorder %s45, %s46
      %p60 = scmp.eq.s32.totalorder %s24, 3
      %p61 = por %p59, %p60
      %p63 = scmp.ne.s32.totalorder %s46, %s62
      %p64 = scmp.eq.s32.totalorder %s24, 0
      %p65 = por %p63, %p64
      %s66 = smul.u32 %s26, 8
      %s67 = sadd.s32 %s66, 8
      %s68 = smul.u32 %s33, 8
      %s69 = sadd.s32 %s68, 8
      %s70 = ssub.s32 %s25, %s37
      %s71 = ssub.s32 %s67, %s69
      %s72 = sor.u32 %s70, %s71
      %p73 = scmp.eq.s32.totalorder %s72, 0
      %s75 = sadd.s32 %s74, 1
      %s76 = scalar_select %p73, %s74, %s75
      %p79 = pneg %p73
      %p80 = scmp.eq.s32.totalorder %s18, 3
      %p81 = por %p79, %p80
      %p82 = scmp.ne.s32.totalorder %s74, %s77
      %p83 = scmp.eq.s32.totalorder %s18, 0
      %p84 = por %p82, %p83
      %p85 = scmp.ne.s32.totalorder %s74, %s77
      %p86 = scmp.eq.s32.totalorder %s23, 3
      %p87 = por %p85, %p86
      %p88 = scmp.ne.s32.totalorder %s77, %s78
      %p89 = scmp.eq.s32.totalorder %s23, 0
      %p90 = por %p88, %p89
      %p91 = scmp.ne.s32.totalorder %s77, %s78
      %p92 = scmp.eq.s32.totalorder %s24, 3
      %p93 = por %p91, %p92
      %p95 = scmp.ne.s32.totalorder %s78, %s94
      %p96 = scmp.eq.s32.totalorder %s24, 0
      %p97 = por %p95, %p96
      %s98 = smul.u32 %s26, 8
      %s99 = sadd.s32 %s98, 9
      %s100 = smul.u32 %s33, 8
      %s101 = sadd.s32 %s100, 9
      %s102 = ssub.s32 %s25, %s37
      %s103 = ssub.s32 %s99, %s101
      %s104 = sor.u32 %s102, %s103
      %p105 = scmp.eq.s32.totalorder %s104, 0
      %s107 = sadd.s32 %s106, 1
      %s108 = scalar_select %p105, %s106, %s107
      %p111 = pneg %p105
      %p112 = scmp.eq.s32.totalorder %s18, 3
      %p113 = por %p111, %p112
      %p114 = scmp.ne.s32.totalorder %s106, %s109
      %p115 = scmp.eq.s32.totalorder %s18, 0
      %p116 = por %p114, %p115
      %p117 = scmp.ne.s32.totalorder %s106, %s109
      %p118 = scmp.eq.s32.totalorder %s23, 3
      %p119 = por %p117, %p118
      %p120 = scmp.ne.s32.totalorder %s109, %s110
      %p121 = scmp.eq.s32.totalorder %s23, 0
      %p122 = por %p120, %p121
      %p123 = scmp.ne.s32.totalorder %s109, %s110
      %p124 = scmp.eq.s32.totalorder %s24, 3
      %p125 = por %p123, %p124
      %p127 = scmp.ne.s32.totalorder %s110, %s126
      %p128 = scmp.eq.s32.totalorder %s24, 0
      %p129 = por %p127, %p128
      %s131 = sadd.s32 %s130, 1
      %p134 = scmp.eq.s32.totalorder %s18, 3
      %p135 = scmp.ne.s32.totalorder %s130, %s132
      %p136 = scmp.eq.s32.totalorder %s18, 0
      %p137 = por %p135, %p136
      %p138 = scmp.ne.s32.totalorder %s130, %s132
      %p139 = scmp.eq.s32.totalorder %s23, 3
      %p140 = por %p138, %p139
      %p141 = scmp.ne.s32.totalorder %s132, %s133
      %p142 = scmp.eq.s32.totalorder %s23, 0
      %p143 = por %p141, %p142
      %p144 = scmp.ne.s32.totalorder %s132, %s133
      %p145 = scmp.eq.s32.totalorder %s24, 3
      %p146 = por %p144, %p145
      %p148 = scmp.ne.s32.totalorder %s133, %s147
      %p149 = scmp.eq.s32.totalorder %s24, 0
      %p150 = por %p148, %p149
      %s151 = smul.u32 %s25, 2
      %s152 = sadd.s32 %s151, %s26
      %s153 = smul.u32 %s37, 2
      %s154 = sadd.s32 %s153, %s33
      %s155 = ssub.s32 %s152, %s154
      %p156 = scmp.eq.s32.totalorder %s155, 0
      %s158 = sadd.s32 %s157, 1
      %s159 = scalar_select %p156, %s157, %s158
      %p162 = pneg %p156
      %p163 = scmp.eq.s32.totalorder %s18, 3
      %p164 = por %p162, %p163
      %p165 = scmp.ne.s32.totalorder %s157, %s160
      %p166 = scmp.eq.s32.totalorder %s18, 0
      %p167 = por %p165, %p166
      %p168 = scmp.ne.s32.totalorder %s157, %s160
      %p169 = scmp.eq.s32.totalorder %s23, 3
      %p170 = por %p168, %p169
      %p171 = scmp.ne.s32.totalorder %s160, %s161
      %p172 = scmp.eq.s32.totalorder %s23, 0
      %p173 = por %p171, %p172
      %p174 = scmp.ne.s32.totalorder %s160, %s161
      %p175 = scmp.eq.s32.totalorder %s24, 3
      %p176 = por %p174, %p175
      %p178 = scmp.ne.s32.totalorder %s161, %s177
      %p179 = scmp.eq.s32.totalorder %s24, 0
      %p180 = por %p178, %p179
      %s181 = ssub.s32 %s25, %s37
      %p182 = scmp.eq.s32.totalorder %s181, 0
      %s184 = sadd.s32 %s183, 1
      %s185 = scalar_select %p182, %s183, %s184
      %p188 = pneg %p182
      %p189 = scmp.eq.s32.totalorder %s18, 3
      %p190 = por %p188, %p189
      %p191 = scmp.ne.s32.totalorder %s183, %s186
      %p192 = scmp.eq.s32.totalorder %s18, 0
      %p193 = por %p191, %p192
      %p194 = scmp.ne.s32.totalorder %s183, %s186
      %p195 = scmp.eq.s32.totalorder %s23, 3
      %p196 = por %p194, %p195
      %p197 = scmp.ne.s32.totalorder %s186, %s187
      %p198 = scmp.eq.s32.totalorder %s23, 0
      %p199 = por %p197, %p198
      %p200 = scmp.ne.s32.totalorder %s186, %s187
      %p201 = scmp.eq.s32.totalorder %s24, 3
      %p202 = por %p200, %p201
      %p204 = scmp.ne.s32.totalorder %s187, %s203
      %p205 = scmp.eq.s32.totalorder %s24, 0
      %p206 = por %p204, %p205
      %p207 = scmp.le.s32.totalorder 1, %s18
      %p208 = scmp.lt.s32.totalorder %s18, 5
      %p209 = pnand %p207, %p208
      %p210 = pneg %p209
      // Predicated region
      $region9: #{tpu_custom_call.1} parent=5 // pred_check
        _
      $region10: #{tpu_custom_call.1} parent=5 // pred_check_branch
        %212 = sbr.rel (%p209) target = $region12
      $region11: #{tpu_custom_call.1} parent=5 // pred_region
        %s213 = ssub.s32 %s18, 1
        // Predicated region
        $region13: #{tpu_custom_call.1} parent=11 // pred_check
          %p214 = pneg %p143
        $region14: #{tpu_custom_call.1} parent=11 // pred_check_branch
          %216 = sbr.rel (%p214) target = $region16
        $region15: #{tpu_custom_call.1} parent=11 // pred_region
          _
        $region16: #{tpu_custom_call.1} parent=11 // pred_fallthru
          _
      $region12: #{tpu_custom_call.1} parent=5 // pred_fallthru
        _
      %p217 = scmp.lt.s32.totalorder %s18, 4
      // Predicated region
      $region17: #{tpu_custom_call.1} parent=5 // pred_check
        %p218 = pneg %p217
      $region18: #{tpu_custom_call.1} parent=5 // pred_check_branch
        %220 = sbr.rel (%p218) target = $region20
      $region19: #{tpu_custom_call.1} parent=5 // pred_region
        // Predicated region
        $region21: #{tpu_custom_call.1} parent=19 // pred_check
          %p221 = pneg %p52
        $region22: #{tpu_custom_call.1} parent=19 // pred_check_branch
          %223 = sbr.rel (%p221) target = $region24
        $region23: #{tpu_custom_call.1} parent=19 // pred_region
          %s224 = smul.u32 8, %s26
          %s225 = ssub.s32 18, %s224
          %p226 = scmp.lt.s32.totalorder %s225, 8
          %s227 = scalar_select %p226, %s225, 8
          %s228 = smul.u32 8, %s227
          %s229 = smul.u32 %s228, 3
          %p230 = scmp.lt.s32.totalorder %s25, 1
          %s231 = scalar_select %p230, %s25, 1
          %p232 = scmp.lt.s32.totalorder %s224, 17
          %s233 = scalar_select %p232, %s224, 17
          %s234 = smul.addr %s233, 3
          %s235 = smul.addr %s231, 54
          %s236 = sadd.s32 %s234, %s235
          %s237 = smul.addr %s236, 8
          %s238 = scalar_lea.vmem %s0, %s237
          %s239 = smul.u32 8, %s26
          %s240 = ssub.s32 18, %s239
          %p241 = scmp.lt.s32.totalorder %s240, 8
          %s242 = scalar_select %p241, %s240, 8
          %s243 = smul.u32 8, %s242
          %s244 = smul.u32 %s243, 3
        $region24: #{tpu_custom_call.1} parent=19 // pred_fallthru
          _
        // Predicated region
        $region25: #{tpu_custom_call.1} parent=19 // pred_check
          %p245 = pneg %p84
        $region26: #{tpu_custom_call.1} parent=19 // pred_check_branch
          %247 = sbr.rel (%p245) target = $region28
        $region27: #{tpu_custom_call.1} parent=19 // pred_region
          %s248 = smul.u32 %s26, 8
          %s249 = sadd.s32 %s248, 8
          %p250 = scmp.lt.s32.totalorder %s25, 1
          %s251 = scalar_select %p250, %s25, 1
          %p252 = scmp.lt.s32.totalorder %s249, 17
          %s253 = scalar_select %p252, %s249, 17
          %s254 = smul.addr %s253, 3
          %s255 = smul.addr %s251, 54
          %s256 = sadd.s32 %s254, %s255
          %s257 = smul.addr %s256, 8
          %s258 = scalar_lea.vmem %s1, %s257
          %s259 = smul.u32 %s26, 8
          %s260 = sadd.s32 %s259, 8
        $region28: #{tpu_custom_call.1} parent=19 // pred_fallthru
          _
        // Predicated region
        $region29: #{tpu_custom_call.1} parent=19 // pred_check
          %p261 = pneg %p116
        $region30: #{tpu_custom_call.1} parent=19 // pred_check_branch
          %263 = sbr.rel (%p261) target = $region32
        $region31: #{tpu_custom_call.1} parent=19 // pred_region
          %s264 = smul.u32 %s26, 8
          %s265 = sadd.s32 %s264, 9
          %p266 = scmp.lt.s32.totalorder %s25, 1
          %s267 = scalar_select %p266, %s25, 1
          %p268 = scmp.lt.s32.totalorder %s265, 17
          %s269 = scalar_select %p268, %s265, 17
          %s270 = smul.addr %s269, 3
          %s271 = smul.addr %s267, 54
          %s272 = sadd.s32 %s270, %s271
          %s273 = smul.addr %s272, 8
          %s274 = scalar_lea.vmem %s2, %s273
          %s275 = smul.u32 %s26, 8
          %s276 = sadd.s32 %s275, 9
        $region32: #{tpu_custom_call.1} parent=19 // pred_fallthru
          _
      $region20: #{tpu_custom_call.1} parent=5 // pred_fallthru
        _
      %p277 = scmp.le.s32.totalorder 1, %s18
      %p278 = scmp.lt.s32.totalorder %s18, 5
      %p279 = pnand %p277, %p278
      %p280 = pneg %p279
      // Predicated region
      $region33: #{tpu_custom_call.1} parent=5 // pred_check
        _
      $region34: #{tpu_custom_call.1} parent=5 // pred_check_branch
        %282 = sbr.rel (%p279) target = $region36
      $region35: #{tpu_custom_call.1} parent=5 // pred_region
        %s283 = ssub.s32 %s18, 1
        %s284 = smul.u32 8, %s28
        %s285 = ssub.s32 18, %s284
        %p286 = scmp.lt.s32.totalorder %s285, 8
        %s287 = scalar_select %p286, %s285, 8
        %s288 = smul.u32 8, %s287
        %s289 = smul.u32 %s288, 3
        %p290 = scmp.lt.s32.totalorder %s27, 1
        %s291 = scalar_select %p290, %s27, 1
        %p292 = scmp.lt.s32.totalorder %s284, 17
        %s293 = scalar_select %p292, %s284, 17
        %s294 = smul.addr %s293, 3
        %s295 = smul.addr %s291, 54
        %s296 = sadd.s32 %s294, %s295
        %s297 = smul.addr %s296, 8
        %s298 = scalar_lea.vmem %s0, %s297
        %p299 = pneg %p58
        %p300 = pneg %p55
        %s301 = smul.u32 %s28, 8
        %s302 = sadd.s32 %s301, 8
        %p303 = scmp.lt.s32.totalorder %s27, 1
        %s304 = scalar_select %p303, %s27, 1
        %p305 = scmp.lt.s32.totalorder %s302, 17
        %s306 = scalar_select %p305, %s302, 17
        %s307 = smul.addr %s306, 3
        %s308 = smul.addr %s304, 54
        %s309 = sadd.s32 %s307, %s308
        %s310 = smul.addr %s309, 8
        %s311 = scalar_lea.vmem %s1, %s310
        %p312 = pneg %p90
        %p313 = pneg %p87
        %s314 = smul.u32 %s28, 8
        %s315 = sadd.s32 %s314, 9
        %p316 = scmp.lt.s32.totalorder %s27, 1
        %s317 = scalar_select %p316, %s27, 1
        %p318 = scmp.lt.s32.totalorder %s315, 17
        %s319 = scalar_select %p318, %s315, 17
        %s320 = smul.addr %s319, 3
        %s321 = smul.addr %s317, 54
        %s322 = sadd.s32 %s320, %s321
        %s323 = smul.addr %s322, 8
        %s324 = scalar_lea.vmem %s2, %s323
        %p325 = pneg %p122
        %p326 = pneg %p119
        %p327 = pneg %p143
        %p328 = pneg %p140
        %p329 = pneg %p173
        %p330 = pneg %p170
        %s331 = sand.u32 %s160, 1
        %s332 = scalar_lea.sflag [#allocation5], %s331
        %s333 = sand.u32 %s160, 1
        %s334 = smul.addr %s333, 128
        %s335 = scalar_lea.vmem [#allocation4], %s334
        %p336 = pneg %p199
        %p337 = pneg %p196
        %s338 = sand.u32 %s186, 1
        %s339 = scalar_lea.sflag [#allocation7], %s338
        %s340 = sand.u32 %s186, 1
        %s341 = smul.addr %s340, 8
        %s342 = scalar_lea.vmem [#allocation6], %s341
        %s343 = smul.u32 8, %s28
        %s344 = ssub.s32 18, %s343
        %p345 = scmp.lt.s32.totalorder %s344, 8
        %s346 = scalar_select %p345, %s344, 8
        %s347 = smul.u32 8, %s346
        %s348 = smul.u32 %s347, 3
        %p349 = scmp.lt.s32.totalorder %s27, 1
        %s350 = scalar_select %p349, %s27, 1
        %p351 = scmp.lt.s32.totalorder %s343, 17
        %s352 = scalar_select %p351, %s343, 17
        %s353 = smul.addr %s352, 3
        %s354 = smul.addr %s350, 54
        %s355 = sadd.s32 %s353, %s354
        %s356 = smul.addr %s355, 8
        %s357 = scalar_lea.vmem %s0, %s356
        %s358 = smul.u32 8, %s28
        %s359 = ssub.s32 18, %s358
        %p360 = scmp.lt.s32.totalorder %s359, 8
        %s361 = scalar_select %p360, %s359, 8
        %s362 = smul.u32 8, %s361
        %s363 = smul.u32 %s362, 3
        %s364 = smul.u32 %s28, 8
        %s365 = sadd.s32 %s364, 8
        %p366 = scmp.lt.s32.totalorder %s27, 1
        %s367 = scalar_select %p366, %s27, 1
        %p368 = scmp.lt.s32.totalorder %s365, 17
        %s369 = scalar_select %p368, %s365, 17
        %s370 = smul.addr %s369, 3
        %s371 = smul.addr %s367, 54
        %s372 = sadd.s32 %s370, %s371
        %s373 = smul.addr %s372, 8
        %s374 = scalar_lea.vmem %s1, %s373
        %s375 = smul.u32 %s28, 8
        %s376 = sadd.s32 %s375, 8
        %s377 = smul.u32 %s28, 8
        %s378 = sadd.s32 %s377, 9
        %p379 = scmp.lt.s32.totalorder %s27, 1
        %s380 = scalar_select %p379, %s27, 1
        %p381 = scmp.lt.s32.totalorder %s378, 17
        %s382 = scalar_select %p381, %s378, 17
        %s383 = smul.addr %s382, 3
        %s384 = smul.addr %s380, 54
        %s385 = sadd.s32 %s383, %s384
        %s386 = smul.addr %s385, 8
        %s387 = scalar_lea.vmem %s2, %s386
        %s388 = smul.u32 %s28, 8
        %s389 = sadd.s32 %s388, 9
        %s390 = smul.u32 %s27, 2
        %s391 = sadd.s32 %s390, %s28
        %s392 = smul.u32 16, %s391
        %v393 = vld [vmem:[%s357] sm:$0xff]
        %v394 = vld [vmem:[%s357 + $0x8] sm:$0xff]
        %v395 = vld [vmem:[%s357 + $0x10] sm:$0x3]
        %v396 = vld [vmem:[%s357 + $0x18] sm:$0xff]
        %v397 = vld [vmem:[%s357 + $0x20] sm:$0xff]
        %v398 = vld [vmem:[%s357 + $0x28] sm:$0x3]
        %v399 = vld [vmem:[%s357 + $0x30] sm:$0xff]
        %v400 = vld [vmem:[%s357 + $0x38] sm:$0xff]
        %v401 = vld [vmem:[%s357 + $0x40] sm:$0x3]
        %v402 = vld [vmem:[%s357 + $0x48] sm:$0xff]
        %v403 = vld [vmem:[%s357 + $0x50] sm:$0xff]
        %v404 = vld [vmem:[%s357 + $0x58] sm:$0x3]
        %v405 = vld [vmem:[%s357 + $0x60] sm:$0xff]
        %v406 = vld [vmem:[%s357 + $0x68] sm:$0xff]
        %v407 = vld [vmem:[%s357 + $0x70] sm:$0x3]
        %v408 = vld [vmem:[%s357 + $0x78] sm:$0xff]
        %v409 = vld [vmem:[%s357 + $0x80] sm:$0xff]
        %v410 = vld [vmem:[%s357 + $0x88] sm:$0x3]
        %v411 = vld [vmem:[%s357 + $0x90] sm:$0xff]
        %v412 = vld [vmem:[%s357 + $0x98] sm:$0xff]
        %v413 = vld [vmem:[%s357 + $0xa0] sm:$0x3]
        %v414 = vld [vmem:[%s357 + $0xa8] sm:$0xff]
        %v415 = vld [vmem:[%s357 + $0xb0] sm:$0xff]
        %v416 = vld [vmem:[%s357 + $0xb8] sm:$0x3]
        %417 = vst [vmem:[#allocation2] sm:$0xff] %v393
        %418 = vst [vmem:[#allocation2 + $0x8] sm:$0xff] %v394
        %419 = vst [vmem:[#allocation2 + $0x10] sm:$0x3] %v395
        %420 = vst [vmem:[#allocation2 + $0x18] sm:$0xff] %v396
        %421 = vst [vmem:[#allocation2 + $0x20] sm:$0xff] %v397
        %422 = vst [vmem:[#allocation2 + $0x28] sm:$0x3] %v398
        %423 = vst [vmem:[#allocation2 + $0x30] sm:$0xff] %v399
        %424 = vst [vmem:[#allocation2 + $0x38] sm:$0xff] %v400
        %425 = vst [vmem:[#allocation2 + $0x40] sm:$0x3] %v401
        %426 = vst [vmem:[#allocation2 + $0x48] sm:$0xff] %v402
        %427 = vst [vmem:[#allocation2 + $0x50] sm:$0xff] %v403
        %428 = vst [vmem:[#allocation2 + $0x58] sm:$0x3] %v404
        %429 = vst [vmem:[#allocation2 + $0x60] sm:$0xff] %v405
        %430 = vst [vmem:[#allocation2 + $0x68] sm:$0xff] %v406
        %431 = vst [vmem:[#allocation2 + $0x70] sm:$0x3] %v407
        %432 = vst [vmem:[#allocation2 + $0x78] sm:$0xff] %v408
        %433 = vst [vmem:[#allocation2 + $0x80] sm:$0xff] %v409
        %434 = vst [vmem:[#allocation2 + $0x88] sm:$0x3] %v410
        %435 = vst [vmem:[#allocation2 + $0x90] sm:$0xff] %v411
        %436 = vst [vmem:[#allocation2 + $0x98] sm:$0xff] %v412
        %437 = vst [vmem:[#allocation2 + $0xa0] sm:$0x3] %v413
        %438 = vst [vmem:[#allocation2 + $0xa8] sm:$0xff] %v414
        %439 = vst [vmem:[#allocation2 + $0xb0] sm:$0xff] %v415
        %440 = vst [vmem:[#allocation2 + $0xb8] sm:$0x3] %v416
        %v441 = vld [vmem:[%s374] sm:$0xff]
        %v442 = vld [vmem:[%s374 + $0x8] sm:$0xff]
        %v443 = vld [vmem:[%s374 + $0x10] sm:$0x3]
        %s444 = scalar_lea.vmem [#allocation2], 192
        %445 = vst [vmem:[%s444] sm:$0xff] %v441
        %446 = vst [vmem:[%s444 + $0x8] sm:$0xff] %v442
        %447 = vst [vmem:[%s444 + $0x10] sm:$0x3] %v443
        %v448 = vld [vmem:[%s387] sm:$0xff]
        %v449 = vld [vmem:[%s387 + $0x8] sm:$0xff]
        %v450 = vld [vmem:[%s387 + $0x10] sm:$0x3]
        %s451 = scalar_lea.vmem [#allocation2], 216
        %452 = vst [vmem:[%s451] sm:$0xff] %v448
        %453 = vst [vmem:[%s451 + $0x8] sm:$0xff] %v449
        %454 = vst [vmem:[%s451 + $0x10] sm:$0x3] %v450
        %v455 = vld [vmem:[#allocation2] sm:$0xff]
        %v456 = vld [vmem:[#allocation2 + $0x8] sm:$0xff]
        %v457 = vld [vmem:[#allocation2 + $0x18] sm:$0xff]
        %v458 = vld [vmem:[#allocation2 + $0x20] sm:$0xff]
        %v459 = vld [vmem:[#allocation2 + $0x30] sm:$0xff]
        %v460 = vld [vmem:[#allocation2 + $0x38] sm:$0xff]
        %v461 = vld [vmem:[#allocation2 + $0x48] sm:$0xff]
        %v462 = vld [vmem:[#allocation2 + $0x50] sm:$0xff]
        %v463 = vld [vmem:[#allocation2 + $0x60] sm:$0xff]
        %v464 = vld [vmem:[#allocation2 + $0x68] sm:$0xff]
        %v465 = vld [vmem:[#allocation2 + $0x78] sm:$0xff]
        %v466 = vld [vmem:[#allocation2 + $0x80] sm:$0xff]
        %v467 = vld [vmem:[#allocation2 + $0x90] sm:$0xff]
        %v468 = vld [vmem:[#allocation2 + $0x98] sm:$0xff]
        %v469 = vld [vmem:[#allocation2 + $0xa8] sm:$0xff]
        %v470 = vld [vmem:[#allocation2 + $0xb0] sm:$0xff]
        %471 = vst [vmem:[#allocation3] sm:$0xff] %v455
        %472 = vst [vmem:[#allocation3 + $0x48] sm:$0xff] %v456
        %473 = vst [vmem:[#allocation3 + $0x90] sm:$0xff] %v457
        %474 = vst [vmem:[#allocation3 + $0xd8] sm:$0xff] %v458
        %475 = vst [vmem:[#allocation3 + $0x120] sm:$0xff] %v459
        %476 = vst [vmem:[#allocation3 + $0x168] sm:$0xff] %v460
        %477 = vst [vmem:[#allocation3 + $0x1b0] sm:$0xff] %v461
        %478 = vst [vmem:[#allocation3 + $0x1f8] sm:$0xff] %v462
        %479 = vst [vmem:[#allocation3 + $0x240] sm:$0xff] %v463
        %480 = vst [vmem:[#allocation3 + $0x288] sm:$0xff] %v464
        %481 = vst [vmem:[#allocation3 + $0x2d0] sm:$0xff] %v465
        %482 = vst [vmem:[#allocation3 + $0x318] sm:$0xff] %v466
        %483 = vst [vmem:[#allocation3 + $0x360] sm:$0xff] %v467
        %484 = vst [vmem:[#allocation3 + $0x3a8] sm:$0xff] %v468
        %485 = vst [vmem:[#allocation3 + $0x3f0] sm:$0xff] %v469
        %486 = vst [vmem:[#allocation3 + $0x438] sm:$0xff] %v470
        %v487 = vld [vmem:[#allocation2 + $0x1] sm:$0xff]
        %v488 = vld [vmem:[#allocation2 + $0x9] sm:$0xff]
        %v489 = vld [vmem:[#allocation2 + $0x19] sm:$0xff]
        %v490 = vld [vmem:[#allocation2 + $0x21] sm:$0xff]
        %v491 = vld [vmem:[#allocation2 + $0x31] sm:$0xff]
        %v492 = vld [vmem:[#allocation2 + $0x39] sm:$0xff]
        %v493 = vld [vmem:[#allocation2 + $0x49] sm:$0xff]
        %v494 = vld [vmem:[#allocation2 + $0x51] sm:$0xff]
        %v495 = vld [vmem:[#allocation2 + $0x61] sm:$0xff]
        %v496 = vld [vmem:[#allocation2 + $0x69] sm:$0xff]
        %v497 = vld [vmem:[#allocation2 + $0x79] sm:$0xff]
        %v498 = vld [vmem:[#allocation2 + $0x81] sm:$0xff]
        %v499 = vld [vmem:[#allocation2 + $0x91] sm:$0xff]
        %v500 = vld [vmem:[#allocation2 + $0x99] sm:$0xff]
        %v501 = vld [vmem:[#allocation2 + $0xa9] sm:$0xff]
        %v502 = vld [vmem:[#allocation2 + $0xb1] sm:$0xff]
        %503 = vst [vmem:[#allocation3 + $0x8] sm:$0xff] %v487
        %504 = vst [vmem:[#allocation3 + $0x50] sm:$0xff] %v488
        %505 = vst [vmem:[#allocation3 + $0x98] sm:$0xff] %v489
        %506 = vst [vmem:[#allocation3 + $0xe0] sm:$0xff] %v490
        %507 = vst [vmem:[#allocation3 + $0x128] sm:$0xff] %v491
        %508 = vst [vmem:[#allocation3 + $0x170] sm:$0xff] %v492
        %509 = vst [vmem:[#allocation3 + $0x1b8] sm:$0xff] %v493
        %510 = vst [vmem:[#allocation3 + $0x200] sm:$0xff] %v494
        %511 = vst [vmem:[#allocation3 + $0x248] sm:$0xff] %v495
        %512 = vst [vmem:[#allocation3 + $0x290] sm:$0xff] %v496
        %513 = vst [vmem:[#allocation3 + $0x2d8] sm:$0xff] %v497
        %514 = vst [vmem:[#allocation3 + $0x320] sm:$0xff] %v498
        %515 = vst [vmem:[#allocation3 + $0x368] sm:$0xff] %v499
        %516 = vst [vmem:[#allocation3 + $0x3b0] sm:$0xff] %v500
        %517 = vst [vmem:[#allocation3 + $0x3f8] sm:$0xff] %v501
        %518 = vst [vmem:[#allocation3 + $0x440] sm:$0xff] %v502
        %v519 = vld [vmem:[#allocation2 + $0x2] sm:$0xff]
        %v520 = vld [vmem:[#allocation2 + $0xa] sm:$0xff]
        %v521 = vld [vmem:[#allocation2 + $0x1a] sm:$0xff]
        %v522 = vld [vmem:[#allocation2 + $0x22] sm:$0xff]
        %v523 = vld [vmem:[#allocation2 + $0x32] sm:$0xff]
        %v524 = vld [vmem:[#allocation2 + $0x3a] sm:$0xff]
        %v525 = vld [vmem:[#allocation2 + $0x4a] sm:$0xff]
        %v526 = vld [vmem:[#allocation2 + $0x52] sm:$0xff]
        %v527 = vld [vmem:[#allocation2 + $0x62] sm:$0xff]
        %v528 = vld [vmem:[#allocation2 + $0x6a] sm:$0xff]
        %v529 = vld [vmem:[#allocation2 + $0x7a] sm:$0xff]
        %v530 = vld [vmem:[#allocation2 + $0x82] sm:$0xff]
        %v531 = vld [vmem:[#allocation2 + $0x92] sm:$0xff]
        %v532 = vld [vmem:[#allocation2 + $0x9a] sm:$0xff]
        %v533 = vld [vmem:[#allocation2 + $0xaa] sm:$0xff]
        %v534 = vld [vmem:[#allocation2 + $0xb2] sm:$0xff]
        %535 = vst [vmem:[#allocation3 + $0x10] sm:$0xff] %v519
        %536 = vst [vmem:[#allocation3 + $0x58] sm:$0xff] %v520
        %537 = vst [vmem:[#allocation3 + $0xa0] sm:$0xff] %v521
        %538 = vst [vmem:[#allocation3 + $0xe8] sm:$0xff] %v522
        %539 = vst [vmem:[#allocation3 + $0x130] sm:$0xff] %v523
        %540 = vst [vmem:[#allocation3 + $0x178] sm:$0xff] %v524
        %541 = vst [vmem:[#allocation3 + $0x1c0] sm:$0xff] %v525
        %542 = vst [vmem:[#allocation3 + $0x208] sm:$0xff] %v526
        %543 = vst [vmem:[#allocation3 + $0x250] sm:$0xff] %v527
        %544 = vst [vmem:[#allocation3 + $0x298] sm:$0xff] %v528
        %545 = vst [vmem:[#allocation3 + $0x2e0] sm:$0xff] %v529
        %546 = vst [vmem:[#allocation3 + $0x328] sm:$0xff] %v530
        %547 = vst [vmem:[#allocation3 + $0x370] sm:$0xff] %v531
        %548 = vst [vmem:[#allocation3 + $0x3b8] sm:$0xff] %v532
        %549 = vst [vmem:[#allocation3 + $0x400] sm:$0xff] %v533
        %550 = vst [vmem:[#allocation3 + $0x448] sm:$0xff] %v534
        %s551 = scalar_lea.vmem [#allocation2], 24
        %v552 = vld [vmem:[%s551] sm:$0xff]
        %v553 = vld [vmem:[%s551 + $0x8] sm:$0xff]
        %v554 = vld [vmem:[%s551 + $0x18] sm:$0xff]
        %v555 = vld [vmem:[%s551 + $0x20] sm:$0xff]
        %v556 = vld [vmem:[%s551 + $0x30] sm:$0xff]
        %v557 = vld [vmem:[%s551 + $0x38] sm:$0xff]
        %v558 = vld [vmem:[%s551 + $0x48] sm:$0xff]
        %v559 = vld [vmem:[%s551 + $0x50] sm:$0xff]
        %v560 = vld [vmem:[%s551 + $0x60] sm:$0xff]
        %v561 = vld [vmem:[%s551 + $0x68] sm:$0xff]
        %v562 = vld [vmem:[%s551 + $0x78] sm:$0xff]
        %v563 = vld [vmem:[%s551 + $0x80] sm:$0xff]
        %v564 = vld [vmem:[%s551 + $0x90] sm:$0xff]
        %v565 = vld [vmem:[%s551 + $0x98] sm:$0xff]
        %v566 = vld [vmem:[%s551 + $0xa8] sm:$0xff]
        %v567 = vld [vmem:[%s551 + $0xb0] sm:$0xff]
        %568 = vst [vmem:[#allocation3 + $0x18] sm:$0xff] %v552
        %569 = vst [vmem:[#allocation3 + $0x60] sm:$0xff] %v553
        %570 = vst [vmem:[#allocation3 + $0xa8] sm:$0xff] %v554
        %571 = vst [vmem:[#allocation3 + $0xf0] sm:$0xff] %v555
        %572 = vst [vmem:[#allocation3 + $0x138] sm:$0xff] %v556
        %573 = vst [vmem:[#allocation3 + $0x180] sm:$0xff] %v557
        %574 = vst [vmem:[#allocation3 + $0x1c8] sm:$0xff] %v558
        %575 = vst [vmem:[#allocation3 + $0x210] sm:$0xff] %v559
        %576 = vst [vmem:[#allocation3 + $0x258] sm:$0xff] %v560
        %577 = vst [vmem:[#allocation3 + $0x2a0] sm:$0xff] %v561
        %578 = vst [vmem:[#allocation3 + $0x2e8] sm:$0xff] %v562
        %579 = vst [vmem:[#allocation3 + $0x330] sm:$0xff] %v563
        %580 = vst [vmem:[#allocation3 + $0x378] sm:$0xff] %v564
        %581 = vst [vmem:[#allocation3 + $0x3c0] sm:$0xff] %v565
        %582 = vst [vmem:[#allocation3 + $0x408] sm:$0xff] %v566
        %583 = vst [vmem:[#allocation3 + $0x450] sm:$0xff] %v567
        %v584 = vld [vmem:[%s551 + $0x1] sm:$0xff]
        %v585 = vld [vmem:[%s551 + $0x9] sm:$0xff]
        %v586 = vld [vmem:[%s551 + $0x19] sm:$0xff]
        %v587 = vld [vmem:[%s551 + $0x21] sm:$0xff]
        %v588 = vld [vmem:[%s551 + $0x31] sm:$0xff]
        %v589 = vld [vmem:[%s551 + $0x39] sm:$0xff]
        %v590 = vld [vmem:[%s551 + $0x49] sm:$0xff]
        %v591 = vld [vmem:[%s551 + $0x51] sm:$0xff]
        %v592 = vld [vmem:[%s551 + $0x61] sm:$0xff]
        %v593 = vld [vmem:[%s551 + $0x69] sm:$0xff]
        %v594 = vld [vmem:[%s551 + $0x79] sm:$0xff]
        %v595 = vld [vmem:[%s551 + $0x81] sm:$0xff]
        %v596 = vld [vmem:[%s551 + $0x91] sm:$0xff]
        %v597 = vld [vmem:[%s551 + $0x99] sm:$0xff]
        %v598 = vld [vmem:[%s551 + $0xa9] sm:$0xff]
        %v599 = vld [vmem:[%s551 + $0xb1] sm:$0xff]
        %600 = vst [vmem:[#allocation3 + $0x20] sm:$0xff] %v584
        %601 = vst [vmem:[#allocation3 + $0x68] sm:$0xff] %v585
        %602 = vst [vmem:[#allocation3 + $0xb0] sm:$0xff] %v586
        %603 = vst [vmem:[#allocation3 + $0xf8] sm:$0xff] %v587
        %604 = vst [vmem:[#allocation3 + $0x140] sm:$0xff] %v588
        %605 = vst [vmem:[#allocation3 + $0x188] sm:$0xff] %v589
        %606 = vst [vmem:[#allocation3 + $0x1d0] sm:$0xff] %v590
        %607 = vst [vmem:[#allocation3 + $0x218] sm:$0xff] %v591
        %608 = vst [vmem:[#allocation3 + $0x260] sm:$0xff] %v592
        %609 = vst [vmem:[#allocation3 + $0x2a8] sm:$0xff] %v593
        %610 = vst [vmem:[#allocation3 + $0x2f0] sm:$0xff] %v594
        %611 = vst [vmem:[#allocation3 + $0x338] sm:$0xff] %v595
        %612 = vst [vmem:[#allocation3 + $0x380] sm:$0xff] %v596
        %613 = vst [vmem:[#allocation3 + $0x3c8] sm:$0xff] %v597
        %614 = vst [vmem:[#allocation3 + $0x410] sm:$0xff] %v598
        %615 = vst [vmem:[#allocation3 + $0x458] sm:$0xff] %v599
        %v616 = vld [vmem:[%s551 + $0x2] sm:$0xff]
        %v617 = vld [vmem:[%s551 + $0xa] sm:$0xff]
        %v618 = vld [vmem:[%s551 + $0x1a] sm:$0xff]
        %v619 = vld [vmem:[%s551 + $0x22] sm:$0xff]
        %v620 = vld [vmem:[%s551 + $0x32] sm:$0xff]
        %v621 = vld [vmem:[%s551 + $0x3a] sm:$0xff]
        %v622 = vld [vmem:[%s551 + $0x4a] sm:$0xff]
        %v623 = vld [vmem:[%s551 + $0x52] sm:$0xff]
        %v624 = vld [vmem:[%s551 + $0x62] sm:$0xff]
        %v625 = vld [vmem:[%s551 + $0x6a] sm:$0xff]
        %v626 = vld [vmem:[%s551 + $0x7a] sm:$0xff]
        %v627 = vld [vmem:[%s551 + $0x82] sm:$0xff]
        %v628 = vld [vmem:[%s551 + $0x92] sm:$0xff]
        %v629 = vld [vmem:[%s551 + $0x9a] sm:$0xff]
        %v630 = vld [vmem:[%s551 + $0xaa] sm:$0xff]
        %v631 = vld [vmem:[%s551 + $0xb2] sm:$0xff]
        %632 = vst [vmem:[#allocation3 + $0x28] sm:$0xff] %v616
        %633 = vst [vmem:[#allocation3 + $0x70] sm:$0xff] %v617
        %634 = vst [vmem:[#allocation3 + $0xb8] sm:$0xff] %v618
        %635 = vst [vmem:[#allocation3 + $0x100] sm:$0xff] %v619
        %636 = vst [vmem:[#allocation3 + $0x148] sm:$0xff] %v620
        %637 = vst [vmem:[#allocation3 + $0x190] sm:$0xff] %v621
        %638 = vst [vmem:[#allocation3 + $0x1d8] sm:$0xff] %v622
        %639 = vst [vmem:[#allocation3 + $0x220] sm:$0xff] %v623
        %640 = vst [vmem:[#allocation3 + $0x268] sm:$0xff] %v624
        %641 = vst [vmem:[#allocation3 + $0x2b0] sm:$0xff] %v625
        %642 = vst [vmem:[#allocation3 + $0x2f8] sm:$0xff] %v626
        %643 = vst [vmem:[#allocation3 + $0x340] sm:$0xff] %v627
        %644 = vst [vmem:[#allocation3 + $0x388] sm:$0xff] %v628
        %645 = vst [vmem:[#allocation3 + $0x3d0] sm:$0xff] %v629
        %646 = vst [vmem:[#allocation3 + $0x418] sm:$0xff] %v630
        %647 = vst [vmem:[#allocation3 + $0x460] sm:$0xff] %v631
        %s648 = scalar_lea.vmem [#allocation2], 48
        %v649 = vld [vmem:[%s648] sm:$0xff]
        %v650 = vld [vmem:[%s648 + $0x8] sm:$0xff]
        %v651 = vld [vmem:[%s648 + $0x18] sm:$0xff]
        %v652 = vld [vmem:[%s648 + $0x20] sm:$0xff]
        %v653 = vld [vmem:[%s648 + $0x30] sm:$0xff]
        %v654 = vld [vmem:[%s648 + $0x38] sm:$0xff]
        %v655 = vld [vmem:[%s648 + $0x48] sm:$0xff]
        %v656 = vld [vmem:[%s648 + $0x50] sm:$0xff]
        %v657 = vld [vmem:[%s648 + $0x60] sm:$0xff]
        %v658 = vld [vmem:[%s648 + $0x68] sm:$0xff]
        %v659 = vld [vmem:[%s648 + $0x78] sm:$0xff]
        %v660 = vld [vmem:[%s648 + $0x80] sm:$0xff]
        %v661 = vld [vmem:[%s648 + $0x90] sm:$0xff]
        %v662 = vld [vmem:[%s648 + $0x98] sm:$0xff]
        %v663 = vld [vmem:[%s648 + $0xa8] sm:$0xff]
        %v664 = vld [vmem:[%s648 + $0xb0] sm:$0xff]
        %665 = vst [vmem:[#allocation3 + $0x30] sm:$0xff] %v649
        %666 = vst [vmem:[#allocation3 + $0x78] sm:$0xff] %v650
        %667 = vst [vmem:[#allocation3 + $0xc0] sm:$0xff] %v651
        %668 = vst [vmem:[#allocation3 + $0x108] sm:$0xff] %v652
        %669 = vst [vmem:[#allocation3 + $0x150] sm:$0xff] %v653
        %670 = vst [vmem:[#allocation3 + $0x198] sm:$0xff] %v654
        %671 = vst [vmem:[#allocation3 + $0x1e0] sm:$0xff] %v655
        %672 = vst [vmem:[#allocation3 + $0x228] sm:$0xff] %v656
        %673 = vst [vmem:[#allocation3 + $0x270] sm:$0xff] %v657
        %674 = vst [vmem:[#allocation3 + $0x2b8] sm:$0xff] %v658
        %675 = vst [vmem:[#allocation3 + $0x300] sm:$0xff] %v659
        %676 = vst [vmem:[#allocation3 + $0x348] sm:$0xff] %v660
        %677 = vst [vmem:[#allocation3 + $0x390] sm:$0xff] %v661
        %678 = vst [vmem:[#allocation3 + $0x3d8] sm:$0xff] %v662
        %679 = vst [vmem:[#allocation3 + $0x420] sm:$0xff] %v663
        %680 = vst [vmem:[#allocation3 + $0x468] sm:$0xff] %v664
        %v681 = vld [vmem:[%s648 + $0x1] sm:$0xff]
        %v682 = vld [vmem:[%s648 + $0x9] sm:$0xff]
        %v683 = vld [vmem:[%s648 + $0x19] sm:$0xff]
        %v684 = vld [vmem:[%s648 + $0x21] sm:$0xff]
        %v685 = vld [vmem:[%s648 + $0x31] sm:$0xff]
        %v686 = vld [vmem:[%s648 + $0x39] sm:$0xff]
        %v687 = vld [vmem:[%s648 + $0x49] sm:$0xff]
        %v688 = vld [vmem:[%s648 + $0x51] sm:$0xff]
        %v689 = vld [vmem:[%s648 + $0x61] sm:$0xff]
        %v690 = vld [vmem:[%s648 + $0x69] sm:$0xff]
        %v691 = vld [vmem:[%s648 + $0x79] sm:$0xff]
        %v692 = vld [vmem:[%s648 + $0x81] sm:$0xff]
        %v693 = vld [vmem:[%s648 + $0x91] sm:$0xff]
        %v694 = vld [vmem:[%s648 + $0x99] sm:$0xff]
        %v695 = vld [vmem:[%s648 + $0xa9] sm:$0xff]
        %v696 = vld [vmem:[%s648 + $0xb1] sm:$0xff]
        %697 = vst [vmem:[#allocation3 + $0x38] sm:$0xff] %v681
        %698 = vst [vmem:[#allocation3 + $0x80] sm:$0xff] %v682
        %699 = vst [vmem:[#allocation3 + $0xc8] sm:$0xff] %v683
        %700 = vst [vmem:[#allocation3 + $0x110] sm:$0xff] %v684
        %701 = vst [vmem:[#allocation3 + $0x158] sm:$0xff] %v685
        %702 = vst [vmem:[#allocation3 + $0x1a0] sm:$0xff] %v686
        %703 = vst [vmem:[#allocation3 + $0x1e8] sm:$0xff] %v687
        %704 = vst [vmem:[#allocation3 + $0x230] sm:$0xff] %v688
        %705 = vst [vmem:[#allocation3 + $0x278] sm:$0xff] %v689
        %706 = vst [vmem:[#allocation3 + $0x2c0] sm:$0xff] %v690
        %707 = vst [vmem:[#allocation3 + $0x308] sm:$0xff] %v691
        %708 = vst [vmem:[#allocation3 + $0x350] sm:$0xff] %v692
        %709 = vst [vmem:[#allocation3 + $0x398] sm:$0xff] %v693
        %710 = vst [vmem:[#allocation3 + $0x3e0] sm:$0xff] %v694
        %711 = vst [vmem:[#allocation3 + $0x428] sm:$0xff] %v695
        %712 = vst [vmem:[#allocation3 + $0x470] sm:$0xff] %v696
        %v713 = vld [vmem:[%s648 + $0x2] sm:$0xff]
        %v714 = vld [vmem:[%s648 + $0xa] sm:$0xff]
        %v715 = vld [vmem:[%s648 + $0x1a] sm:$0xff]
        %v716 = vld [vmem:[%s648 + $0x22] sm:$0xff]
        %v717 = vld [vmem:[%s648 + $0x32] sm:$0xff]
        %v718 = vld [vmem:[%s648 + $0x3a] sm:$0xff]
        %v719 = vld [vmem:[%s648 + $0x4a] sm:$0xff]
        %v720 = vld [vmem:[%s648 + $0x52] sm:$0xff]
        %v721 = vld [vmem:[%s648 + $0x62] sm:$0xff]
        %v722 = vld [vmem:[%s648 + $0x6a] sm:$0xff]
        %v723 = vld [vmem:[%s648 + $0x7a] sm:$0xff]
        %v724 = vld [vmem:[%s648 + $0x82] sm:$0xff]
        %v725 = vld [vmem:[%s648 + $0x92] sm:$0xff]
        %v726 = vld [vmem:[%s648 + $0x9a] sm:$0xff]
        %v727 = vld [vmem:[%s648 + $0xaa] sm:$0xff]
        %v728 = vld [vmem:[%s648 + $0xb2] sm:$0xff]
        %729 = vst [vmem:[#allocation3 + $0x40] sm:$0xff] %v713
        %730 = vst [vmem:[#allocation3 + $0x88] sm:$0xff] %v714
        %731 = vst [vmem:[#allocation3 + $0xd0] sm:$0xff] %v715
        %732 = vst [vmem:[#allocation3 + $0x118] sm:$0xff] %v716
        %733 = vst [vmem:[#allocation3 + $0x160] sm:$0xff] %v717
        %734 = vst [vmem:[#allocation3 + $0x1a8] sm:$0xff] %v718
        %735 = vst [vmem:[#allocation3 + $0x1f0] sm:$0xff] %v719
        %736 = vst [vmem:[#allocation3 + $0x238] sm:$0xff] %v720
        %737 = vst [vmem:[#allocation3 + $0x280] sm:$0xff] %v721
        %738 = vst [vmem:[#allocation3 + $0x2c8] sm:$0xff] %v722
        %739 = vst [vmem:[#allocation3 + $0x310] sm:$0xff] %v723
        %740 = vst [vmem:[#allocation3 + $0x358] sm:$0xff] %v724
        %741 = vst [vmem:[#allocation3 + $0x3a0] sm:$0xff] %v725
        %742 = vst [vmem:[#allocation3 + $0x3e8] sm:$0xff] %v726
        %743 = vst [vmem:[#allocation3 + $0x430] sm:$0xff] %v727
        %744 = vst [vmem:[#allocation3 + $0x478] sm:$0xff] %v728
        %v745 = vld [vmem:[#allocation3] sm:$0xff]
        %v746 = vld [vmem:[#allocation3 + $0x8] sm:$0xff]
        %v747 = vld [vmem:[#allocation3 + $0x10] sm:$0xff]
        %v748 = vld [vmem:[#allocation3 + $0x18] sm:$0xff]
        %v749 = vld [vmem:[#allocation3 + $0x20] sm:$0xff]
        %v750 = vld [vmem:[#allocation3 + $0x28] sm:$0xff]
        %v751 = vld [vmem:[#allocation3 + $0x30] sm:$0xff]
        %v752 = vld [vmem:[#allocation3 + $0x38] sm:$0xff]
        %v753 = vld [vmem:[#allocation3 + $0x40] sm:$0xff]
        %v754 = vld [vmem:[#allocation3 + $0x48] sm:$0xff]
        %v755 = vld [vmem:[#allocation3 + $0x50] sm:$0xff]
        %v756 = vld [vmem:[#allocation3 + $0x58] sm:$0xff]
        %v757 = vld [vmem:[#allocation3 + $0x60] sm:$0xff]
        %v758 = vld [vmem:[#allocation3 + $0x68] sm:$0xff]
        %v759 = vld [vmem:[#allocation3 + $0x70] sm:$0xff]
        %v760 = vld [vmem:[#allocation3 + $0x78] sm:$0xff]
        %v761 = vld [vmem:[#allocation3 + $0x80] sm:$0xff]
        %v762 = vld [vmem:[#allocation3 + $0x88] sm:$0xff]
        %v763 = vld [vmem:[#allocation3 + $0x90] sm:$0xff]
        %v764 = vld [vmem:[#allocation3 + $0x98] sm:$0xff]
        %v765 = vld [vmem:[#allocation3 + $0xa0] sm:$0xff]
        %v766 = vld [vmem:[#allocation3 + $0xa8] sm:$0xff]
        %v767 = vld [vmem:[#allocation3 + $0xb0] sm:$0xff]
        %v768 = vld [vmem:[#allocation3 + $0xb8] sm:$0xff]
        %v769 = vld [vmem:[#allocation3 + $0xc0] sm:$0xff]
        %v770 = vld [vmem:[#allocation3 + $0xc8] sm:$0xff]
        %v771 = vld [vmem:[#allocation3 + $0xd0] sm:$0xff]
        %v772 = vld [vmem:[#allocation3 + $0xd8] sm:$0xff]
        %v773 = vld [vmem:[#allocation3 + $0xe0] sm:$0xff]
        %v774 = vld [vmem:[#allocation3 + $0xe8] sm:$0xff]
        %v775 = vld [vmem:[#allocation3 + $0xf0] sm:$0xff]
        %v776 = vld [vmem:[#allocation3 + $0xf8] sm:$0xff]
        %v777 = vld [vmem:[#allocation3 + $0x100] sm:$0xff]
        %v778 = vld [vmem:[#allocation3 + $0x108] sm:$0xff]
        %v779 = vld [vmem:[#allocation3 + $0x110] sm:$0xff]
        %v780 = vld [vmem:[#allocation3 + $0x118] sm:$0xff]
        %v781 = vld [vmem:[#allocation3 + $0x120] sm:$0xff]
        %v782 = vld [vmem:[#allocation3 + $0x128] sm:$0xff]
        %v783 = vld [vmem:[#allocation3 + $0x130] sm:$0xff]
        %v784 = vld [vmem:[#allocation3 + $0x138] sm:$0xff]
        %v785 = vld [vmem:[#allocation3 + $0x140] sm:$0xff]
        %v786 = vld [vmem:[#allocation3 + $0x148] sm:$0xff]
        %v787 = vld [vmem:[#allocation3 + $0x150] sm:$0xff]
        %v788 = vld [vmem:[#allocation3 + $0x158] sm:$0xff]
        %v789 = vld [vmem:[#allocation3 + $0x160] sm:$0xff]
        %v790 = vld [vmem:[#allocation3 + $0x168] sm:$0xff]
        %v791 = vld [vmem:[#allocation3 + $0x170] sm:$0xff]
        %v792 = vld [vmem:[#allocation3 + $0x178] sm:$0xff]
        %v793 = vld [vmem:[#allocation3 + $0x180] sm:$0xff]
        %v794 = vld [vmem:[#allocation3 + $0x188] sm:$0xff]
        %v795 = vld [vmem:[#allocation3 + $0x190] sm:$0xff]
        %v796 = vld [vmem:[#allocation3 + $0x198] sm:$0xff]
        %v797 = vld [vmem:[#allocation3 + $0x1a0] sm:$0xff]
        %v798 = vld [vmem:[#allocation3 + $0x1a8] sm:$0xff]
        %v799 = vld [vmem:[#allocation3 + $0x1b0] sm:$0xff]
        %v800 = vld [vmem:[#allocation3 + $0x1b8] sm:$0xff]
        %v801 = vld [vmem:[#allocation3 + $0x1c0] sm:$0xff]
        %v802 = vld [vmem:[#allocation3 + $0x1c8] sm:$0xff]
        %v803 = vld [vmem:[#allocation3 + $0x1d0] sm:$0xff]
        %v804 = vld [vmem:[#allocation3 + $0x1d8] sm:$0xff]
        %v805 = vld [vmem:[#allocation3 + $0x1e0] sm:$0xff]
        %v806 = vld [vmem:[#allocation3 + $0x1e8] sm:$0xff]
        %v807 = vld [vmem:[#allocation3 + $0x1f0] sm:$0xff]
        %v808 = vld [vmem:[#allocation3 + $0x1f8] sm:$0xff]
        %v809 = vld [vmem:[#allocation3 + $0x200] sm:$0xff]
        %v810 = vld [vmem:[#allocation3 + $0x208] sm:$0xff]
        %v811 = vld [vmem:[#allocation3 + $0x210] sm:$0xff]
        %v812 = vld [vmem:[#allocation3 + $0x218] sm:$0xff]
        %v813 = vld [vmem:[#allocation3 + $0x220] sm:$0xff]
        %v814 = vld [vmem:[#allocation3 + $0x228] sm:$0xff]
        %v815 = vld [vmem:[#allocation3 + $0x230] sm:$0xff]
        %v816 = vld [vmem:[#allocation3 + $0x238] sm:$0xff]
        %v817 = vld [vmem:[#allocation3 + $0x240] sm:$0xff]
        %v818 = vld [vmem:[#allocation3 + $0x248] sm:$0xff]
        %v819 = vld [vmem:[#allocation3 + $0x250] sm:$0xff]
        %v820 = vld [vmem:[#allocation3 + $0x258] sm:$0xff]
        %v821 = vld [vmem:[#allocation3 + $0x260] sm:$0xff]
        %v822 = vld [vmem:[#allocation3 + $0x268] sm:$0xff]
        %v823 = vld [vmem:[#allocation3 + $0x270] sm:$0xff]
        %v824 = vld [vmem:[#allocation3 + $0x278] sm:$0xff]
        %v825 = vld [vmem:[#allocation3 + $0x280] sm:$0xff]
        %v826 = vld [vmem:[#allocation3 + $0x288] sm:$0xff]
        %v827 = vld [vmem:[#allocation3 + $0x290] sm:$0xff]
        %v828 = vld [vmem:[#allocation3 + $0x298] sm:$0xff]
        %v829 = vld [vmem:[#allocation3 + $0x2a0] sm:$0xff]
        %v830 = vld [vmem:[#allocation3 + $0x2a8] sm:$0xff]
        %v831 = vld [vmem:[#allocation3 + $0x2b0] sm:$0xff]
        %v832 = vld [vmem:[#allocation3 + $0x2b8] sm:$0xff]
        %v833 = vld [vmem:[#allocation3 + $0x2c0] sm:$0xff]
        %v834 = vld [vmem:[#allocation3 + $0x2c8] sm:$0xff]
        %v835 = vld [vmem:[#allocation3 + $0x2d0] sm:$0xff]
        %v836 = vld [vmem:[#allocation3 + $0x2d8] sm:$0xff]
        %v837 = vld [vmem:[#allocation3 + $0x2e0] sm:$0xff]
        %v838 = vld [vmem:[#allocation3 + $0x2e8] sm:$0xff]
        %v839 = vld [vmem:[#allocation3 + $0x2f0] sm:$0xff]
        %v840 = vld [vmem:[#allocation3 + $0x2f8] sm:$0xff]
        %v841 = vld [vmem:[#allocation3 + $0x300] sm:$0xff]
        %v842 = vld [vmem:[#allocation3 + $0x308] sm:$0xff]
        %v843 = vld [vmem:[#allocation3 + $0x310] sm:$0xff]
        %v844 = vld [vmem:[#allocation3 + $0x318] sm:$0xff]
        %v845 = vld [vmem:[#allocation3 + $0x320] sm:$0xff]
        %v846 = vld [vmem:[#allocation3 + $0x328] sm:$0xff]
        %v847 = vld [vmem:[#allocation3 + $0x330] sm:$0xff]
        %v848 = vld [vmem:[#allocation3 + $0x338] sm:$0xff]
        %v849 = vld [vmem:[#allocation3 + $0x340] sm:$0xff]
        %v850 = vld [vmem:[#allocation3 + $0x348] sm:$0xff]
        %v851 = vld [vmem:[#allocation3 + $0x350] sm:$0xff]
        %v852 = vld [vmem:[#allocation3 + $0x358] sm:$0xff]
        %v853 = vld [vmem:[#allocation3 + $0x360] sm:$0xff]
        %v854 = vld [vmem:[#allocation3 + $0x368] sm:$0xff]
        %v855 = vld [vmem:[#allocation3 + $0x370] sm:$0xff]
        %v856 = vld [vmem:[#allocation3 + $0x378] sm:$0xff]
        %v857 = vld [vmem:[#allocation3 + $0x380] sm:$0xff]
        %v858 = vld [vmem:[#allocation3 + $0x388] sm:$0xff]
        %v859 = vld [vmem:[#allocation3 + $0x390] sm:$0xff]
        %v860 = vld [vmem:[#allocation3 + $0x398] sm:$0xff]
        %v861 = vld [vmem:[#allocation3 + $0x3a0] sm:$0xff]
        %v862 = vld [vmem:[#allocation3 + $0x3a8] sm:$0xff]
        %v863 = vld [vmem:[#allocation3 + $0x3b0] sm:$0xff]
        %v864 = vld [vmem:[#allocation3 + $0x3b8] sm:$0xff]
        %v865 = vld [vmem:[#allocation3 + $0x3c0] sm:$0xff]
        %v866 = vld [vmem:[#allocation3 + $0x3c8] sm:$0xff]
        %v867 = vld [vmem:[#allocation3 + $0x3d0] sm:$0xff]
        %v868 = vld [vmem:[#allocation3 + $0x3d8] sm:$0xff]
        %v869 = vld [vmem:[#allocation3 + $0x3e0] sm:$0xff]
        %v870 = vld [vmem:[#allocation3 + $0x3e8] sm:$0xff]
        %v871 = vld [vmem:[#allocation3 + $0x3f0] sm:$0xff]
        %v872 = vld [vmem:[#allocation3 + $0x3f8] sm:$0xff]
        %v873 = vld [vmem:[#allocation3 + $0x400] sm:$0xff]
        %v874 = vld [vmem:[#allocation3 + $0x408] sm:$0xff]
        %v875 = vld [vmem:[#allocation3 + $0x410] sm:$0xff]
        %v876 = vld [vmem:[#allocation3 + $0x418] sm:$0xff]
        %v877 = vld [vmem:[#allocation3 + $0x420] sm:$0xff]
        %v878 = vld [vmem:[#allocation3 + $0x428] sm:$0xff]
        %v879 = vld [vmem:[#allocation3 + $0x430] sm:$0xff]
        %v880 = vld [vmem:[#allocation3 + $0x438] sm:$0xff]
        %v881 = vld [vmem:[#allocation3 + $0x440] sm:$0xff]
        %v882 = vld [vmem:[#allocation3 + $0x448] sm:$0xff]
        %v883 = vld [vmem:[#allocation3 + $0x450] sm:$0xff]
        %v884 = vld [vmem:[#allocation3 + $0x458] sm:$0xff]
        %v885 = vld [vmem:[#allocation3 + $0x460] sm:$0xff]
        %v886 = vld [vmem:[#allocation3 + $0x468] sm:$0xff]
        %v887 = vld [vmem:[#allocation3 + $0x470] sm:$0xff]
        %v888 = vld [vmem:[#allocation3 + $0x478] sm:$0xff]
        %v889 = vld [vmem:[%s3] sm:$0xff]
        %v890 = vld [vmem:[%s3 + $0x8] sm:$0xff]
        %v891 = vld [vmem:[%s3 + $0x10] sm:$0xff]
        %v892 = vld [vmem:[%s3 + $0x18] sm:$0xff]
        %v893 = vld [vmem:[%s3 + $0x20] sm:$0xff]
        %v894 = vld [vmem:[%s3 + $0x28] sm:$0xff]
        %v895 = vld [vmem:[%s3 + $0x30] sm:$0xff]
        %v896 = vld [vmem:[%s3 + $0x38] sm:$0xff]
        %v897 = vld [vmem:[%s3 + $0x40] sm:$0xff]
        %v898 = vld [vmem:[%s3 + $0x48] sm:$0xff]
        %v899 = vld [vmem:[%s3 + $0x50] sm:$0xff]
        %v900 = vld [vmem:[%s3 + $0x58] sm:$0xff]
        %v901 = vld [vmem:[%s3 + $0x60] sm:$0xff]
        %v902 = vld [vmem:[%s3 + $0x68] sm:$0xff]
        %v903 = vld [vmem:[%s3 + $0x70] sm:$0xff]
        %v904 = vld [vmem:[%s3 + $0x78] sm:$0xff]
        %v905 = vld [vmem:[%s3 + $0x80] sm:$0xff]
        %v906 = vld [vmem:[%s3 + $0x88] sm:$0xff]
        %v907 = vld [vmem:[%s3 + $0x90] sm:$0xff]
        %v908 = vld [vmem:[%s3 + $0x98] sm:$0xff]
        %v909 = vld [vmem:[%s3 + $0xa0] sm:$0xff]
        %v910 = vld [vmem:[%s3 + $0xa8] sm:$0xff]
        %v911 = vld [vmem:[%s3 + $0xb0] sm:$0xff]
        %v912 = vld [vmem:[%s3 + $0xb8] sm:$0xff]
        %v913 = vld [vmem:[%s3 + $0xc0] sm:$0xff]
        %v914 = vld [vmem:[%s3 + $0xc8] sm:$0xff]
        %v915 = vld [vmem:[%s3 + $0xd0] sm:$0xff]
        %v916 = vld [vmem:[%s3 + $0xd8] sm:$0xff]
        %v917 = vld [vmem:[%s3 + $0xe0] sm:$0xff]
        %v918 = vld [vmem:[%s3 + $0xe8] sm:$0xff]
        %v919 = vld [vmem:[%s3 + $0xf0] sm:$0xff]
        %v920 = vld [vmem:[%s3 + $0xf8] sm:$0xff]
        %v921 = vld [vmem:[%s3 + $0x100] sm:$0xff]
        %v922 = vld [vmem:[%s3 + $0x108] sm:$0xff]
        %v923 = vld [vmem:[%s3 + $0x110] sm:$0xff]
        %v924 = vld [vmem:[%s3 + $0x118] sm:$0xff]
        %v925 = vld [vmem:[%s3 + $0x120] sm:$0xff]
        %v926 = vld [vmem:[%s3 + $0x128] sm:$0xff]
        %v927 = vld [vmem:[%s3 + $0x130] sm:$0xff]
        %v928 = vld [vmem:[%s3 + $0x138] sm:$0xff]
        %v929 = vld [vmem:[%s3 + $0x140] sm:$0xff]
        %v930 = vld [vmem:[%s3 + $0x148] sm:$0xff]
        %v931 = vld [vmem:[%s3 + $0x150] sm:$0xff]
        %v932 = vld [vmem:[%s3 + $0x158] sm:$0xff]
        %v933 = vld [vmem:[%s3 + $0x160] sm:$0xff]
        %v934 = vld [vmem:[%s3 + $0x168] sm:$0xff]
        %v935 = vld [vmem:[%s3 + $0x170] sm:$0xff]
        %v936 = vld [vmem:[%s3 + $0x178] sm:$0xff]
        %v937 = vld [vmem:[%s3 + $0x180] sm:$0xff]
        %v938 = vld [vmem:[%s3 + $0x188] sm:$0xff]
        %v939 = vld [vmem:[%s3 + $0x190] sm:$0xff]
        %v940 = vld [vmem:[%s3 + $0x198] sm:$0xff]
        %v941 = vld [vmem:[%s3 + $0x1a0] sm:$0xff]
        %v942 = vld [vmem:[%s3 + $0x1a8] sm:$0xff]
        %v943 = vld [vmem:[%s3 + $0x1b0] sm:$0xff]
        %v944 = vld [vmem:[%s3 + $0x1b8] sm:$0xff]
        %v945 = vld [vmem:[%s3 + $0x1c0] sm:$0xff]
        %v946 = vld [vmem:[%s3 + $0x1c8] sm:$0xff]
        %v947 = vld [vmem:[%s3 + $0x1d0] sm:$0xff]
        %v948 = vld [vmem:[%s3 + $0x1d8] sm:$0xff]
        %v949 = vld [vmem:[%s3 + $0x1e0] sm:$0xff]
        %v950 = vld [vmem:[%s3 + $0x1e8] sm:$0xff]
        %v951 = vld [vmem:[%s3 + $0x1f0] sm:$0xff]
        %v952 = vld [vmem:[%s3 + $0x1f8] sm:$0xff]
        %v953 = vld [vmem:[%s3 + $0x200] sm:$0xff]
        %v954 = vld [vmem:[%s3 + $0x208] sm:$0xff]
        %v955 = vld [vmem:[%s3 + $0x210] sm:$0xff]
        %v956 = vld [vmem:[%s3 + $0x218] sm:$0xff]
        %v957 = vld [vmem:[%s3 + $0x220] sm:$0xff]
        %v958 = vld [vmem:[%s3 + $0x228] sm:$0xff]
        %v959 = vld [vmem:[%s3 + $0x230] sm:$0xff]
        %v960 = vld [vmem:[%s3 + $0x238] sm:$0xff]
        %v961 = vld [vmem:[%s3 + $0x240] sm:$0xff]
        %v962 = vld [vmem:[%s3 + $0x248] sm:$0xff]
        %v963 = vld [vmem:[%s3 + $0x250] sm:$0xff]
        %v964 = vld [vmem:[%s3 + $0x258] sm:$0xff]
        %v965 = vld [vmem:[%s3 + $0x260] sm:$0xff]
        %v966 = vld [vmem:[%s3 + $0x268] sm:$0xff]
        %v967 = vld [vmem:[%s3 + $0x270] sm:$0xff]
        %v968 = vld [vmem:[%s3 + $0x278] sm:$0xff]
        %v969 = vld [vmem:[%s3 + $0x280] sm:$0xff]
        %v970 = vld [vmem:[%s3 + $0x288] sm:$0xff]
        %v971 = vld [vmem:[%s3 + $0x290] sm:$0xff]
        %v972 = vld [vmem:[%s3 + $0x298] sm:$0xff]
        %v973 = vld [vmem:[%s3 + $0x2a0] sm:$0xff]
        %v974 = vld [vmem:[%s3 + $0x2a8] sm:$0xff]
        %v975 = vld [vmem:[%s3 + $0x2b0] sm:$0xff]
        %v976 = vld [vmem:[%s3 + $0x2b8] sm:$0xff]
        %v977 = vld [vmem:[%s3 + $0x2c0] sm:$0xff]
        %v978 = vld [vmem:[%s3 + $0x2c8] sm:$0xff]
        %v979 = vld [vmem:[%s3 + $0x2d0] sm:$0xff]
        %v980 = vld [vmem:[%s3 + $0x2d8] sm:$0xff]
        %v981 = vld [vmem:[%s3 + $0x2e0] sm:$0xff]
        %v982 = vld [vmem:[%s3 + $0x2e8] sm:$0xff]
        %v983 = vld [vmem:[%s3 + $0x2f0] sm:$0xff]
        %v984 = vld [vmem:[%s3 + $0x2f8] sm:$0xff]
        %v985 = vld [vmem:[%s3 + $0x300] sm:$0xff]
        %v986 = vld [vmem:[%s3 + $0x308] sm:$0xff]
        %v987 = vld [vmem:[%s3 + $0x310] sm:$0xff]
        %v988 = vld [vmem:[%s3 + $0x318] sm:$0xff]
        %v989 = vld [vmem:[%s3 + $0x320] sm:$0xff]
        %v990 = vld [vmem:[%s3 + $0x328] sm:$0xff]
        %v991 = vld [vmem:[%s3 + $0x330] sm:$0xff]
        %v992 = vld [vmem:[%s3 + $0x338] sm:$0xff]
        %v993 = vld [vmem:[%s3 + $0x340] sm:$0xff]
        %v994 = vld [vmem:[%s3 + $0x348] sm:$0xff]
        %v995 = vld [vmem:[%s3 + $0x350] sm:$0xff]
        %v996 = vld [vmem:[%s3 + $0x358] sm:$0xff]
        %v997 = vld [vmem:[%s3 + $0x360] sm:$0xff]
        %v998 = vld [vmem:[%s3 + $0x368] sm:$0xff]
        %v999 = vld [vmem:[%s3 + $0x370] sm:$0xff]
        %v1000 = vld [vmem:[%s3 + $0x378] sm:$0xff]
        %v1001 = vld [vmem:[%s3 + $0x380] sm:$0xff]
        %v1002 = vld [vmem:[%s3 + $0x388] sm:$0xff]
        %v1003 = vld [vmem:[%s3 + $0x390] sm:$0xff]
        %v1004 = vld [vmem:[%s3 + $0x398] sm:$0xff]
        %v1005 = vld [vmem:[%s3 + $0x3a0] sm:$0xff]
        %v1006 = vld [vmem:[%s3 + $0x3a8] sm:$0xff]
        %v1007 = vld [vmem:[%s3 + $0x3b0] sm:$0xff]
        %v1008 = vld [vmem:[%s3 + $0x3b8] sm:$0xff]
        %v1009 = vld [vmem:[%s3 + $0x3c0] sm:$0xff]
        %v1010 = vld [vmem:[%s3 + $0x3c8] sm:$0xff]
        %v1011 = vld [vmem:[%s3 + $0x3d0] sm:$0xff]
        %v1012 = vld [vmem:[%s3 + $0x3d8] sm:$0xff]
        %v1013 = vld [vmem:[%s3 + $0x3e0] sm:$0xff]
        %v1014 = vld [vmem:[%s3 + $0x3e8] sm:$0xff]
        %v1015 = vld [vmem:[%s3 + $0x3f0] sm:$0xff]
        %v1016 = vld [vmem:[%s3 + $0x3f8] sm:$0xff]
        %v1017 = vld [vmem:[%s3 + $0x400] sm:$0xff]
        %v1018 = vld [vmem:[%s3 + $0x408] sm:$0xff]
        %v1019 = vld [vmem:[%s3 + $0x410] sm:$0xff]
        %v1020 = vld [vmem:[%s3 + $0x418] sm:$0xff]
        %v1021 = vld [vmem:[%s3 + $0x420] sm:$0xff]
        %v1022 = vld [vmem:[%s3 + $0x428] sm:$0xff]
        %v1023 = vld [vmem:[%s3 + $0x430] sm:$0xff]
        %v1024 = vld [vmem:[%s3 + $0x438] sm:$0xff]
        %v1025 = vld [vmem:[%s3 + $0x440] sm:$0xff]
        %v1026 = vld [vmem:[%s3 + $0x448] sm:$0xff]
        %v1027 = vld [vmem:[%s3 + $0x450] sm:$0xff]
        %v1028 = vld [vmem:[%s3 + $0x458] sm:$0xff]
        %v1029 = vld [vmem:[%s3 + $0x460] sm:$0xff]
        %v1030 = vld [vmem:[%s3 + $0x468] sm:$0xff]
        %v1031 = vld [vmem:[%s3 + $0x470] sm:$0xff]
        %v1032 = vld [vmem:[%s3 + $0x478] sm:$0xff]
        %1033 = vmatpush.msra.mxu0 %v904
        %1034 = vmatpush.msra.mxu0 %v903
        %1035 = vmatpush.msra.mxu0 %v902
        %1036 = vmatpush.msra.mxu0 %v901
        %1037 = vmatpush.msra.mxu0 %v900
        %1038 = vmatpush.msra.mxu0 %v899
        %1039 = vmatpush.msra.mxu0 %v898
        %1040 = vmatpush.msra.mxu0 %v897
        %1041 = vmatpush.msra.mxu0 %v896
        %1042 = vmatpush.msra.mxu0 %v895
        %1043 = vmatpush.msra.mxu0 %v894
        %1044 = vmatpush.msra.mxu0 %v893
        %1045 = vmatpush.msra.mxu0 %v892
        %1046 = vmatpush.msra.mxu0 %v891
        %1047 = vmatpush.msra.mxu0 %v890
        %1048 = vmatpush.msra.mxu0 %v889
        %1049 = vmatmul.f32.gmra.mxu0 %v745
        %v1050 = vpop.f32.mrf.mxu0
        %v1051 = vadd.f32 0.0, %v1050
        %1052 = vmatmul.f32.gmra.mxu0 %v754
        %v1053 = vpop.f32.mrf.mxu0
        %v1054 = vadd.f32 0.0, %v1053
        %1055 = vmatmul.f32.gmra.mxu0 %v763
        %v1056 = vpop.f32.mrf.mxu0
        %v1057 = vadd.f32 0.0, %v1056
        %1058 = vmatmul.f32.gmra.mxu0 %v772
        %v1059 = vpop.f32.mrf.mxu0
        %v1060 = vadd.f32 0.0, %v1059
        %1061 = vmatmul.f32.gmra.mxu0 %v781
        %v1062 = vpop.f32.mrf.mxu0
        %v1063 = vadd.f32 0.0, %v1062
        %1064 = vmatmul.f32.gmra.mxu0 %v790
        %v1065 = vpop.f32.mrf.mxu0
        %v1066 = vadd.f32 0.0, %v1065
        %1067 = vmatmul.f32.gmra.mxu0 %v799
        %v1068 = vpop.f32.mrf.mxu0
        %v1069 = vadd.f32 0.0, %v1068
        %1070 = vmatmul.f32.gmra.mxu0 %v808
        %v1071 = vpop.f32.mrf.mxu0
        %v1072 = vadd.f32 0.0, %v1071
        %1073 = vmatmul.f32.gmra.mxu0 %v817
        %v1074 = vpop.f32.mrf.mxu0
        %v1075 = vadd.f32 0.0, %v1074
        %1076 = vmatmul.f32.gmra.mxu0 %v826
        %v1077 = vpop.f32.mrf.mxu0
        %v1078 = vadd.f32 0.0, %v1077
        %1079 = vmatmul.f32.gmra.mxu0 %v835
        %v1080 = vpop.f32.mrf.mxu0
        %v1081 = vadd.f32 0.0, %v1080
        %1082 = vmatmul.f32.gmra.mxu0 %v844
        %v1083 = vpop.f32.mrf.mxu0
        %v1084 = vadd.f32 0.0, %v1083
        %1085 = vmatmul.f32.gmra.mxu0 %v853
        %v1086 = vpop.f32.mrf.mxu0
        %v1087 = vadd.f32 0.0, %v1086
        %1088 = vmatmul.f32.gmra.mxu0 %v862
        %v1089 = vpop.f32.mrf.mxu0
        %v1090 = vadd.f32 0.0, %v1089
        %1091 = vmatmul.f32.gmra.mxu0 %v871
        %v1092 = vpop.f32.mrf.mxu0
        %v1093 = vadd.f32 0.0, %v1092
        %1094 = vmatmul.f32.gmra.mxu0 %v880
        %v1095 = vpop.f32.mrf.mxu0
        %v1096 = vadd.f32 0.0, %v1095
        %1097 = vdwg.mxu0
        %1098 = vmatpush.msra.mxu0 %v920
        %1099 = vmatpush.msra.mxu0 %v919
        %1100 = vmatpush.msra.mxu0 %v918
        %1101 = vmatpush.msra.mxu0 %v917
        %1102 = vmatpush.msra.mxu0 %v916
        %1103 = vmatpush.msra.mxu0 %v915
        %1104 = vmatpush.msra.mxu0 %v914
        %1105 = vmatpush.msra.mxu0 %v913
        %1106 = vmatpush.msra.mxu0 %v912
        %1107 = vmatpush.msra.mxu0 %v911
        %1108 = vmatpush.msra.mxu0 %v910
        %1109 = vmatpush.msra.mxu0 %v909
        %1110 = vmatpush.msra.mxu0 %v908
        %1111 = vmatpush.msra.mxu0 %v907
        %1112 = vmatpush.msra.mxu0 %v906
        %1113 = vmatpush.msra.mxu0 %v905
        %1114 = vmatmul.f32.gmra.mxu0 %v746
        %v1115 = vpop.f32.mrf.mxu0
        %v1116 = vadd.f32 %v1051, %v1115
        %1117 = vmatmul.f32.gmra.mxu0 %v755
        %v1118 = vpop.f32.mrf.mxu0
        %v1119 = vadd.f32 %v1054, %v1118
        %1120 = vmatmul.f32.gmra.mxu0 %v764
        %v1121 = vpop.f32.mrf.mxu0
        %v1122 = vadd.f32 %v1057, %v1121
        %1123 = vmatmul.f32.gmra.mxu0 %v773
        %v1124 = vpop.f32.mrf.mxu0
        %v1125 = vadd.f32 %v1060, %v1124
        %1126 = vmatmul.f32.gmra.mxu0 %v782
        %v1127 = vpop.f32.mrf.mxu0
        %v1128 = vadd.f32 %v1063, %v1127
        %1129 = vmatmul.f32.gmra.mxu0 %v791
        %v1130 = vpop.f32.mrf.mxu0
        %v1131 = vadd.f32 %v1066, %v1130
        %1132 = vmatmul.f32.gmra.mxu0 %v800
        %v1133 = vpop.f32.mrf.mxu0
        %v1134 = vadd.f32 %v1069, %v1133
        %1135 = vmatmul.f32.gmra.mxu0 %v809
        %v1136 = vpop.f32.mrf.mxu0
        %v1137 = vadd.f32 %v1072, %v1136
        %1138 = vmatmul.f32.gmra.mxu0 %v818
        %v1139 = vpop.f32.mrf.mxu0
        %v1140 = vadd.f32 %v1075, %v1139
        %1141 = vmatmul.f32.gmra.mxu0 %v827
        %v1142 = vpop.f32.mrf.mxu0
        %v1143 = vadd.f32 %v1078, %v1142
        %1144 = vmatmul.f32.gmra.mxu0 %v836
        %v1145 = vpop.f32.mrf.mxu0
        %v1146 = vadd.f32 %v1081, %v1145
        %1147 = vmatmul.f32.gmra.mxu0 %v845
        %v1148 = vpop.f32.mrf.mxu0
        %v1149 = vadd.f32 %v1084, %v1148
        %1150 = vmatmul.f32.gmra.mxu0 %v854
        %v1151 = vpop.f32.mrf.mxu0
        %v1152 = vadd.f32 %v1087, %v1151
        %1153 = vmatmul.f32.gmra.mxu0 %v863
        %v1154 = vpop.f32.mrf.mxu0
        %v1155 = vadd.f32 %v1090, %v1154
        %1156 = vmatmul.f32.gmra.mxu0 %v872
        %v1157 = vpop.f32.mrf.mxu0
        %v1158 = vadd.f32 %v1093, %v1157
        %1159 = vmatmul.f32.gmra.mxu0 %v881
        %v1160 = vpop.f32.mrf.mxu0
        %v1161 = vadd.f32 %v1096, %v1160
        %1162 = vdwg.mxu0
        %1163 = vmatpush.msra.mxu0 %v936
        %1164 = vmatpush.msra.mxu0 %v935
        %1165 = vmatpush.msra.mxu0 %v934
        %1166 = vmatpush.msra.mxu0 %v933
        %1167 = vmatpush.msra.mxu0 %v932
        %1168 = vmatpush.msra.mxu0 %v931
        %1169 = vmatpush.msra.mxu0 %v930
        %1170 = vmatpush.msra.mxu0 %v929
        %1171 = vmatpush.msra.mxu0 %v928
        %1172 = vmatpush.msra.mxu0 %v927
        %1173 = vmatpush.msra.mxu0 %v926
        %1174 = vmatpush.msra.mxu0 %v925
        %1175 = vmatpush.msra.mxu0 %v924
        %1176 = vmatpush.msra.mxu0 %v923
        %1177 = vmatpush.msra.mxu0 %v922
        %1178 = vmatpush.msra.mxu0 %v921
        %1179 = vmatmul.f32.gmra.mxu0 %v747
        %v1180 = vpop.f32.mrf.mxu0
        %v1181 = vadd.f32 %v1116, %v1180
        %1182 = vmatmul.f32.gmra.mxu0 %v756
        %v1183 = vpop.f32.mrf.mxu0
        %v1184 = vadd.f32 %v1119, %v1183
        %1185 = vmatmul.f32.gmra.mxu0 %v765
        %v1186 = vpop.f32.mrf.mxu0
        %v1187 = vadd.f32 %v1122, %v1186
        %1188 = vmatmul.f32.gmra.mxu0 %v774
        %v1189 = vpop.f32.mrf.mxu0
        %v1190 = vadd.f32 %v1125, %v1189
        %1191 = vmatmul.f32.gmra.mxu0 %v783
        %v1192 = vpop.f32.mrf.mxu0
        %v1193 = vadd.f32 %v1128, %v1192
        %1194 = vmatmul.f32.gmra.mxu0 %v792
        %v1195 = vpop.f32.mrf.mxu0
        %v1196 = vadd.f32 %v1131, %v1195
        %1197 = vmatmul.f32.gmra.mxu0 %v801
        %v1198 = vpop.f32.mrf.mxu0
        %v1199 = vadd.f32 %v1134, %v1198
        %1200 = vmatmul.f32.gmra.mxu0 %v810
        %v1201 = vpop.f32.mrf.mxu0
        %v1202 = vadd.f32 %v1137, %v1201
        %1203 = vmatmul.f32.gmra.mxu0 %v819
        %v1204 = vpop.f32.mrf.mxu0
        %v1205 = vadd.f32 %v1140, %v1204
        %1206 = vmatmul.f32.gmra.mxu0 %v828
        %v1207 = vpop.f32.mrf.mxu0
        %v1208 = vadd.f32 %v1143, %v1207
        %1209 = vmatmul.f32.gmra.mxu0 %v837
        %v1210 = vpop.f32.mrf.mxu0
        %v1211 = vadd.f32 %v1146, %v1210
        %1212 = vmatmul.f32.gmra.mxu0 %v846
        %v1213 = vpop.f32.mrf.mxu0
        %v1214 = vadd.f32 %v1149, %v1213
        %1215 = vmatmul.f32.gmra.mxu0 %v855
        %v1216 = vpop.f32.mrf.mxu0
        %v1217 = vadd.f32 %v1152, %v1216
        %1218 = vmatmul.f32.gmra.mxu0 %v864
        %v1219 = vpop.f32.mrf.mxu0
        %v1220 = vadd.f32 %v1155, %v1219
        %1221 = vmatmul.f32.gmra.mxu0 %v873
        %v1222 = vpop.f32.mrf.mxu0
        %v1223 = vadd.f32 %v1158, %v1222
        %1224 = vmatmul.f32.gmra.mxu0 %v882
        %v1225 = vpop.f32.mrf.mxu0
        %v1226 = vadd.f32 %v1161, %v1225
        %1227 = vdwg.mxu0
        %1228 = vmatpush.msra.mxu0 %v952
        %1229 = vmatpush.msra.mxu0 %v951
        %1230 = vmatpush.msra.mxu0 %v950
        %1231 = vmatpush.msra.mxu0 %v949
        %1232 = vmatpush.msra.mxu0 %v948
        %1233 = vmatpush.msra.mxu0 %v947
        %1234 = vmatpush.msra.mxu0 %v946
        %1235 = vmatpush.msra.mxu0 %v945
        %1236 = vmatpush.msra.mxu0 %v944
        %1237 = vmatpush.msra.mxu0 %v943
        %1238 = vmatpush.msra.mxu0 %v942
        %1239 = vmatpush.msra.mxu0 %v941
        %1240 = vmatpush.msra.mxu0 %v940
        %1241 = vmatpush.msra.mxu0 %v939
        %1242 = vmatpush.msra.mxu0 %v938
        %1243 = vmatpush.msra.mxu0 %v937
        %1244 = vmatmul.f32.gmra.mxu0 %v748
        %v1245 = vpop.f32.mrf.mxu0
        %v1246 = vadd.f32 %v1181, %v1245
        %1247 = vmatmul.f32.gmra.mxu0 %v757
        %v1248 = vpop.f32.mrf.mxu0
        %v1249 = vadd.f32 %v1184, %v1248
        %1250 = vmatmul.f32.gmra.mxu0 %v766
        %v1251 = vpop.f32.mrf.mxu0
        %v1252 = vadd.f32 %v1187, %v1251
        %1253 = vmatmul.f32.gmra.mxu0 %v775
        %v1254 = vpop.f32.mrf.mxu0
        %v1255 = vadd.f32 %v1190, %v1254
        %1256 = vmatmul.f32.gmra.mxu0 %v784
        %v1257 = vpop.f32.mrf.mxu0
        %v1258 = vadd.f32 %v1193, %v1257
        %1259 = vmatmul.f32.gmra.mxu0 %v793
        %v1260 = vpop.f32.mrf.mxu0
        %v1261 = vadd.f32 %v1196, %v1260
        %1262 = vmatmul.f32.gmra.mxu0 %v802
        %v1263 = vpop.f32.mrf.mxu0
        %v1264 = vadd.f32 %v1199, %v1263
        %1265 = vmatmul.f32.gmra.mxu0 %v811
        %v1266 = vpop.f32.mrf.mxu0
        %v1267 = vadd.f32 %v1202, %v1266
        %1268 = vmatmul.f32.gmra.mxu0 %v820
        %v1269 = vpop.f32.mrf.mxu0
        %v1270 = vadd.f32 %v1205, %v1269
        %1271 = vmatmul.f32.gmra.mxu0 %v829
        %v1272 = vpop.f32.mrf.mxu0
        %v1273 = vadd.f32 %v1208, %v1272
        %1274 = vmatmul.f32.gmra.mxu0 %v838
        %v1275 = vpop.f32.mrf.mxu0
        %v1276 = vadd.f32 %v1211, %v1275
        %1277 = vmatmul.f32.gmra.mxu0 %v847
        %v1278 = vpop.f32.mrf.mxu0
        %v1279 = vadd.f32 %v1214, %v1278
        %1280 = vmatmul.f32.gmra.mxu0 %v856
        %v1281 = vpop.f32.mrf.mxu0
        %v1282 = vadd.f32 %v1217, %v1281
        %1283 = vmatmul.f32.gmra.mxu0 %v865
        %v1284 = vpop.f32.mrf.mxu0
        %v1285 = vadd.f32 %v1220, %v1284
        %1286 = vmatmul.f32.gmra.mxu0 %v874
        %v1287 = vpop.f32.mrf.mxu0
        %v1288 = vadd.f32 %v1223, %v1287
        %1289 = vmatmul.f32.gmra.mxu0 %v883
        %v1290 = vpop.f32.mrf.mxu0
        %v1291 = vadd.f32 %v1226, %v1290
        %1292 = vdwg.mxu0
        %1293 = vmatpush.msra.mxu0 %v968
        %1294 = vmatpush.msra.mxu0 %v967
        %1295 = vmatpush.msra.mxu0 %v966
        %1296 = vmatpush.msra.mxu0 %v965
        %1297 = vmatpush.msra.mxu0 %v964
        %1298 = vmatpush.msra.mxu0 %v963
        %1299 = vmatpush.msra.mxu0 %v962
        %1300 = vmatpush.msra.mxu0 %v961
        %1301 = vmatpush.msra.mxu0 %v960
        %1302 = vmatpush.msra.mxu0 %v959
        %1303 = vmatpush.msra.mxu0 %v958
        %1304 = vmatpush.msra.mxu0 %v957
        %1305 = vmatpush.msra.mxu0 %v956
        %1306 = vmatpush.msra.mxu0 %v955
        %1307 = vmatpush.msra.mxu0 %v954
        %1308 = vmatpush.msra.mxu0 %v953
        %1309 = vmatmul.f32.gmra.mxu0 %v749
        %v1310 = vpop.f32.mrf.mxu0
        %v1311 = vadd.f32 %v1246, %v1310
        %1312 = vmatmul.f32.gmra.mxu0 %v758
        %v1313 = vpop.f32.mrf.mxu0
        %v1314 = vadd.f32 %v1249, %v1313
        %1315 = vmatmul.f32.gmra.mxu0 %v767
        %v1316 = vpop.f32.mrf.mxu0
        %v1317 = vadd.f32 %v1252, %v1316
        %1318 = vmatmul.f32.gmra.mxu0 %v776
        %v1319 = vpop.f32.mrf.mxu0
        %v1320 = vadd.f32 %v1255, %v1319
        %1321 = vmatmul.f32.gmra.mxu0 %v785
        %v1322 = vpop.f32.mrf.mxu0
        %v1323 = vadd.f32 %v1258, %v1322
        %1324 = vmatmul.f32.gmra.mxu0 %v794
        %v1325 = vpop.f32.mrf.mxu0
        %v1326 = vadd.f32 %v1261, %v1325
        %1327 = vmatmul.f32.gmra.mxu0 %v803
        %v1328 = vpop.f32.mrf.mxu0
        %v1329 = vadd.f32 %v1264, %v1328
        %1330 = vmatmul.f32.gmra.mxu0 %v812
        %v1331 = vpop.f32.mrf.mxu0
        %v1332 = vadd.f32 %v1267, %v1331
        %1333 = vmatmul.f32.gmra.mxu0 %v821
        %v1334 = vpop.f32.mrf.mxu0
        %v1335 = vadd.f32 %v1270, %v1334
        %1336 = vmatmul.f32.gmra.mxu0 %v830
        %v1337 = vpop.f32.mrf.mxu0
        %v1338 = vadd.f32 %v1273, %v1337
        %1339 = vmatmul.f32.gmra.mxu0 %v839
        %v1340 = vpop.f32.mrf.mxu0
        %v1341 = vadd.f32 %v1276, %v1340
        %1342 = vmatmul.f32.gmra.mxu0 %v848
        %v1343 = vpop.f32.mrf.mxu0
        %v1344 = vadd.f32 %v1279, %v1343
        %1345 = vmatmul.f32.gmra.mxu0 %v857
        %v1346 = vpop.f32.mrf.mxu0
        %v1347 = vadd.f32 %v1282, %v1346
        %1348 = vmatmul.f32.gmra.mxu0 %v866
        %v1349 = vpop.f32.mrf.mxu0
        %v1350 = vadd.f32 %v1285, %v1349
        %1351 = vmatmul.f32.gmra.mxu0 %v875
        %v1352 = vpop.f32.mrf.mxu0
        %v1353 = vadd.f32 %v1288, %v1352
        %1354 = vmatmul.f32.gmra.mxu0 %v884
        %v1355 = vpop.f32.mrf.mxu0
        %v1356 = vadd.f32 %v1291, %v1355
        %1357 = vdwg.mxu0
        %1358 = vmatpush.msra.mxu0 %v984
        %1359 = vmatpush.msra.mxu0 %v983
        %1360 = vmatpush.msra.mxu0 %v982
        %1361 = vmatpush.msra.mxu0 %v981
        %1362 = vmatpush.msra.mxu0 %v980
        %1363 = vmatpush.msra.mxu0 %v979
        %1364 = vmatpush.msra.mxu0 %v978
        %1365 = vmatpush.msra.mxu0 %v977
        %1366 = vmatpush.msra.mxu0 %v976
        %1367 = vmatpush.msra.mxu0 %v975
        %1368 = vmatpush.msra.mxu0 %v974
        %1369 = vmatpush.msra.mxu0 %v973
        %1370 = vmatpush.msra.mxu0 %v972
        %1371 = vmatpush.msra.mxu0 %v971
        %1372 = vmatpush.msra.mxu0 %v970
        %1373 = vmatpush.msra.mxu0 %v969
        %1374 = vmatmul.f32.gmra.mxu0 %v750
        %v1375 = vpop.f32.mrf.mxu0
        %v1376 = vadd.f32 %v1311, %v1375
        %1377 = vmatmul.f32.gmra.mxu0 %v759
        %v1378 = vpop.f32.mrf.mxu0
        %v1379 = vadd.f32 %v1314, %v1378
        %1380 = vmatmul.f32.gmra.mxu0 %v768
        %v1381 = vpop.f32.mrf.mxu0
        %v1382 = vadd.f32 %v1317, %v1381
        %1383 = vmatmul.f32.gmra.mxu0 %v777
        %v1384 = vpop.f32.mrf.mxu0
        %v1385 = vadd.f32 %v1320, %v1384
        %1386 = vmatmul.f32.gmra.mxu0 %v786
        %v1387 = vpop.f32.mrf.mxu0
        %v1388 = vadd.f32 %v1323, %v1387
        %1389 = vmatmul.f32.gmra.mxu0 %v795
        %v1390 = vpop.f32.mrf.mxu0
        %v1391 = vadd.f32 %v1326, %v1390
        %1392 = vmatmul.f32.gmra.mxu0 %v804
        %v1393 = vpop.f32.mrf.mxu0
        %v1394 = vadd.f32 %v1329, %v1393
        %1395 = vmatmul.f32.gmra.mxu0 %v813
        %v1396 = vpop.f32.mrf.mxu0
        %v1397 = vadd.f32 %v1332, %v1396
        %1398 = vmatmul.f32.gmra.mxu0 %v822
        %v1399 = vpop.f32.mrf.mxu0
        %v1400 = vadd.f32 %v1335, %v1399
        %1401 = vmatmul.f32.gmra.mxu0 %v831
        %v1402 = vpop.f32.mrf.mxu0
        %v1403 = vadd.f32 %v1338, %v1402
        %1404 = vmatmul.f32.gmra.mxu0 %v840
        %v1405 = vpop.f32.mrf.mxu0
        %v1406 = vadd.f32 %v1341, %v1405
        %1407 = vmatmul.f32.gmra.mxu0 %v849
        %v1408 = vpop.f32.mrf.mxu0
        %v1409 = vadd.f32 %v1344, %v1408
        %1410 = vmatmul.f32.gmra.mxu0 %v858
        %v1411 = vpop.f32.mrf.mxu0
        %v1412 = vadd.f32 %v1347, %v1411
        %1413 = vmatmul.f32.gmra.mxu0 %v867
        %v1414 = vpop.f32.mrf.mxu0
        %v1415 = vadd.f32 %v1350, %v1414
        %1416 = vmatmul.f32.gmra.mxu0 %v876
        %v1417 = vpop.f32.mrf.mxu0
        %v1418 = vadd.f32 %v1353, %v1417
        %1419 = vmatmul.f32.gmra.mxu0 %v885
        %v1420 = vpop.f32.mrf.mxu0
        %v1421 = vadd.f32 %v1356, %v1420
        %1422 = vdwg.mxu0
        %1423 = vmatpush.msra.mxu0 %v1000
        %1424 = vmatpush.msra.mxu0 %v999
        %1425 = vmatpush.msra.mxu0 %v998
        %1426 = vmatpush.msra.mxu0 %v997
        %1427 = vmatpush.msra.mxu0 %v996
        %1428 = vmatpush.msra.mxu0 %v995
        %1429 = vmatpush.msra.mxu0 %v994
        %1430 = vmatpush.msra.mxu0 %v993
        %1431 = vmatpush.msra.mxu0 %v992
        %1432 = vmatpush.msra.mxu0 %v991
        %1433 = vmatpush.msra.mxu0 %v990
        %1434 = vmatpush.msra.mxu0 %v989
        %1435 = vmatpush.msra.mxu0 %v988
        %1436 = vmatpush.msra.mxu0 %v987
        %1437 = vmatpush.msra.mxu0 %v986
        %1438 = vmatpush.msra.mxu0 %v985
        %1439 = vmatmul.f32.gmra.mxu0 %v751
        %v1440 = vpop.f32.mrf.mxu0
        %v1441 = vadd.f32 %v1376, %v1440
        %1442 = vmatmul.f32.gmra.mxu0 %v760
        %v1443 = vpop.f32.mrf.mxu0
        %v1444 = vadd.f32 %v1379, %v1443
        %1445 = vmatmul.f32.gmra.mxu0 %v769
        %v1446 = vpop.f32.mrf.mxu0
        %v1447 = vadd.f32 %v1382, %v1446
        %1448 = vmatmul.f32.gmra.mxu0 %v778
        %v1449 = vpop.f32.mrf.mxu0
        %v1450 = vadd.f32 %v1385, %v1449
        %1451 = vmatmul.f32.gmra.mxu0 %v787
        %v1452 = vpop.f32.mrf.mxu0
        %v1453 = vadd.f32 %v1388, %v1452
        %1454 = vmatmul.f32.gmra.mxu0 %v796
        %v1455 = vpop.f32.mrf.mxu0
        %v1456 = vadd.f32 %v1391, %v1455
        %1457 = vmatmul.f32.gmra.mxu0 %v805
        %v1458 = vpop.f32.mrf.mxu0
        %v1459 = vadd.f32 %v1394, %v1458
        %1460 = vmatmul.f32.gmra.mxu0 %v814
        %v1461 = vpop.f32.mrf.mxu0
        %v1462 = vadd.f32 %v1397, %v1461
        %1463 = vmatmul.f32.gmra.mxu0 %v823
        %v1464 = vpop.f32.mrf.mxu0
        %v1465 = vadd.f32 %v1400, %v1464
        %1466 = vmatmul.f32.gmra.mxu0 %v832
        %v1467 = vpop.f32.mrf.mxu0
        %v1468 = vadd.f32 %v1403, %v1467
        %1469 = vmatmul.f32.gmra.mxu0 %v841
        %v1470 = vpop.f32.mrf.mxu0
        %v1471 = vadd.f32 %v1406, %v1470
        %1472 = vmatmul.f32.gmra.mxu0 %v850
        %v1473 = vpop.f32.mrf.mxu0
        %v1474 = vadd.f32 %v1409, %v1473
        %1475 = vmatmul.f32.gmra.mxu0 %v859
        %v1476 = vpop.f32.mrf.mxu0
        %v1477 = vadd.f32 %v1412, %v1476
        %1478 = vmatmul.f32.gmra.mxu0 %v868
        %v1479 = vpop.f32.mrf.mxu0
        %v1480 = vadd.f32 %v1415, %v1479
        %1481 = vmatmul.f32.gmra.mxu0 %v877
        %v1482 = vpop.f32.mrf.mxu0
        %v1483 = vadd.f32 %v1418, %v1482
        %1484 = vmatmul.f32.gmra.mxu0 %v886
        %v1485 = vpop.f32.mrf.mxu0
        %v1486 = vadd.f32 %v1421, %v1485
        %1487 = vdwg.mxu0
        %1488 = vmatpush.msra.mxu0 %v1016
        %1489 = vmatpush.msra.mxu0 %v1015
        %1490 = vmatpush.msra.mxu0 %v1014
        %1491 = vmatpush.msra.mxu0 %v1013
        %1492 = vmatpush.msra.mxu0 %v1012
        %1493 = vmatpush.msra.mxu0 %v1011
        %1494 = vmatpush.msra.mxu0 %v1010
        %1495 = vmatpush.msra.mxu0 %v1009
        %1496 = vmatpush.msra.mxu0 %v1008
        %1497 = vmatpush.msra.mxu0 %v1007
        %1498 = vmatpush.msra.mxu0 %v1006
        %1499 = vmatpush.msra.mxu0 %v1005
        %1500 = vmatpush.msra.mxu0 %v1004
        %1501 = vmatpush.msra.mxu0 %v1003
        %1502 = vmatpush.msra.mxu0 %v1002
        %1503 = vmatpush.msra.mxu0 %v1001
        %1504 = vmatmul.f32.gmra.mxu0 %v752
        %v1505 = vpop.f32.mrf.mxu0
        %v1506 = vadd.f32 %v1441, %v1505
        %1507 = vmatmul.f32.gmra.mxu0 %v761
        %v1508 = vpop.f32.mrf.mxu0
        %v1509 = vadd.f32 %v1444, %v1508
        %1510 = vmatmul.f32.gmra.mxu0 %v770
        %v1511 = vpop.f32.mrf.mxu0
        %v1512 = vadd.f32 %v1447, %v1511
        %1513 = vmatmul.f32.gmra.mxu0 %v779
        %v1514 = vpop.f32.mrf.mxu0
        %v1515 = vadd.f32 %v1450, %v1514
        %1516 = vmatmul.f32.gmra.mxu0 %v788
        %v1517 = vpop.f32.mrf.mxu0
        %v1518 = vadd.f32 %v1453, %v1517
        %1519 = vmatmul.f32.gmra.mxu0 %v797
        %v1520 = vpop.f32.mrf.mxu0
        %v1521 = vadd.f32 %v1456, %v1520
        %1522 = vmatmul.f32.gmra.mxu0 %v806
        %v1523 = vpop.f32.mrf.mxu0
        %v1524 = vadd.f32 %v1459, %v1523
        %1525 = vmatmul.f32.gmra.mxu0 %v815
        %v1526 = vpop.f32.mrf.mxu0
        %v1527 = vadd.f32 %v1462, %v1526
        %1528 = vmatmul.f32.gmra.mxu0 %v824
        %v1529 = vpop.f32.mrf.mxu0
        %v1530 = vadd.f32 %v1465, %v1529
        %1531 = vmatmul.f32.gmra.mxu0 %v833
        %v1532 = vpop.f32.mrf.mxu0
        %v1533 = vadd.f32 %v1468, %v1532
        %1534 = vmatmul.f32.gmra.mxu0 %v842
        %v1535 = vpop.f32.mrf.mxu0
        %v1536 = vadd.f32 %v1471, %v1535
        %1537 = vmatmul.f32.gmra.mxu0 %v851
        %v1538 = vpop.f32.mrf.mxu0
        %v1539 = vadd.f32 %v1474, %v1538
        %1540 = vmatmul.f32.gmra.mxu0 %v860
        %v1541 = vpop.f32.mrf.mxu0
        %v1542 = vadd.f32 %v1477, %v1541
        %1543 = vmatmul.f32.gmra.mxu0 %v869
        %v1544 = vpop.f32.mrf.mxu0
        %v1545 = vadd.f32 %v1480, %v1544
        %1546 = vmatmul.f32.gmra.mxu0 %v878
        %v1547 = vpop.f32.mrf.mxu0
        %v1548 = vadd.f32 %v1483, %v1547
        %1549 = vmatmul.f32.gmra.mxu0 %v887
        %v1550 = vpop.f32.mrf.mxu0
        %v1551 = vadd.f32 %v1486, %v1550
        %1552 = vdwg.mxu0
        %1553 = vmatpush.msra.mxu0 %v1032
        %1554 = vmatpush.msra.mxu0 %v1031
        %1555 = vmatpush.msra.mxu0 %v1030
        %1556 = vmatpush.msra.mxu0 %v1029
        %1557 = vmatpush.msra.mxu0 %v1028
        %1558 = vmatpush.msra.mxu0 %v1027
        %1559 = vmatpush.msra.mxu0 %v1026
        %1560 = vmatpush.msra.mxu0 %v1025
        %1561 = vmatpush.msra.mxu0 %v1024
        %1562 = vmatpush.msra.mxu0 %v1023
        %1563 = vmatpush.msra.mxu0 %v1022
        %1564 = vmatpush.msra.mxu0 %v1021
        %1565 = vmatpush.msra.mxu0 %v1020
        %1566 = vmatpush.msra.mxu0 %v1019
        %1567 = vmatpush.msra.mxu0 %v1018
        %1568 = vmatpush.msra.mxu0 %v1017
        %1569 = vmatmul.f32.gmra.mxu0 %v753
        %v1570 = vpop.f32.mrf.mxu0
        %v1571 = vadd.f32 %v1506, %v1570
        %1572 = vmatmul.f32.gmra.mxu0 %v762
        %v1573 = vpop.f32.mrf.mxu0
        %v1574 = vadd.f32 %v1509, %v1573
        %1575 = vmatmul.f32.gmra.mxu0 %v771
        %v1576 = vpop.f32.mrf.mxu0
        %v1577 = vadd.f32 %v1512, %v1576
        %1578 = vmatmul.f32.gmra.mxu0 %v780
        %v1579 = vpop.f32.mrf.mxu0
        %v1580 = vadd.f32 %v1515, %v1579
        %1581 = vmatmul.f32.gmra.mxu0 %v789
        %v1582 = vpop.f32.mrf.mxu0
        %v1583 = vadd.f32 %v1518, %v1582
        %1584 = vmatmul.f32.gmra.mxu0 %v798
        %v1585 = vpop.f32.mrf.mxu0
        %v1586 = vadd.f32 %v1521, %v1585
        %1587 = vmatmul.f32.gmra.mxu0 %v807
        %v1588 = vpop.f32.mrf.mxu0
        %v1589 = vadd.f32 %v1524, %v1588
        %1590 = vmatmul.f32.gmra.mxu0 %v816
        %v1591 = vpop.f32.mrf.mxu0
        %v1592 = vadd.f32 %v1527, %v1591
        %1593 = vmatmul.f32.gmra.mxu0 %v825
        %v1594 = vpop.f32.mrf.mxu0
        %v1595 = vadd.f32 %v1530, %v1594
        %1596 = vmatmul.f32.gmra.mxu0 %v834
        %v1597 = vpop.f32.mrf.mxu0
        %v1598 = vadd.f32 %v1533, %v1597
        %1599 = vmatmul.f32.gmra.mxu0 %v843
        %v1600 = vpop.f32.mrf.mxu0
        %v1601 = vadd.f32 %v1536, %v1600
        %1602 = vmatmul.f32.gmra.mxu0 %v852
        %v1603 = vpop.f32.mrf.mxu0
        %v1604 = vadd.f32 %v1539, %v1603
        %1605 = vmatmul.f32.gmra.mxu0 %v861
        %v1606 = vpop.f32.mrf.mxu0
        %v1607 = vadd.f32 %v1542, %v1606
        %1608 = vmatmul.f32.gmra.mxu0 %v870
        %v1609 = vpop.f32.mrf.mxu0
        %v1610 = vadd.f32 %v1545, %v1609
        %1611 = vmatmul.f32.gmra.mxu0 %v879
        %v1612 = vpop.f32.mrf.mxu0
        %v1613 = vadd.f32 %v1548, %v1612
        %1614 = vmatmul.f32.gmra.mxu0 %v888
        %v1615 = vpop.f32.mrf.mxu0
        %v1616 = vadd.f32 %v1551, %v1615
        %1617 = vdwg.mxu0
        %1618 = vst [vmem:[%s335] sm:$0xff] %v1571
        %1619 = vst [vmem:[%s335 + $0x8] sm:$0xff] %v1574
        %1620 = vst [vmem:[%s335 + $0x10] sm:$0xff] %v1577
        %1621 = vst [vmem:[%s335 + $0x18] sm:$0xff] %v1580
        %1622 = vst [vmem:[%s335 + $0x20] sm:$0xff] %v1583
        %1623 = vst [vmem:[%s335 + $0x28] sm:$0xff] %v1586
        %1624 = vst [vmem:[%s335 + $0x30] sm:$0xff] %v1589
        %1625 = vst [vmem:[%s335 + $0x38] sm:$0xff] %v1592
        %1626 = vst [vmem:[%s335 + $0x40] sm:$0xff] %v1595
        %1627 = vst [vmem:[%s335 + $0x48] sm:$0xff] %v1598
        %1628 = vst [vmem:[%s335 + $0x50] sm:$0xff] %v1601
        %1629 = vst [vmem:[%s335 + $0x58] sm:$0xff] %v1604
        %1630 = vst [vmem:[%s335 + $0x60] sm:$0xff] %v1607
        %1631 = vst [vmem:[%s335 + $0x68] sm:$0xff] %v1610
        %1632 = vst [vmem:[%s335 + $0x70] sm:$0xff] %v1613
        %1633 = vst [vmem:[%s335 + $0x78] sm:$0xff] %v1616
        %p1634 = scmp.eq.s32.totalorder %s28, 0
        // Predicated region
        $region37: #{tpu_custom_call.1} parent=35 // pred_check
          %p1635 = pneg %p1634
        $region38: #{tpu_custom_call.1} parent=35 // pred_check_branch
          %1637 = sbr.rel (%p1635) target = $region40
        $region39: #{tpu_custom_call.1} parent=35 // pred_region
          %1638 = vst [vmem:[%s342] sm:$0xff] 0.0
        $region40: #{tpu_custom_call.1} parent=35 // pred_fallthru
          _
        %v1639 = vld [vmem:[%s342] sm:$0x1]
        %v1640 = vadd.f32 %v1571, %v1574
        %v1641 = vadd.f32 %v1640, %v1577
        %v1642 = vadd.f32 %v1641, %v1580
        %v1643 = vadd.f32 %v1642, %v1583
        %v1644 = vadd.f32 %v1643, %v1586
        %v1645 = vadd.f32 %v1644, %v1589
        %v1646 = vadd.f32 %v1645, %v1592
        %v1647 = vadd.f32 %v1646, %v1595
        %v1648 = vadd.f32 %v1647, %v1598
        %v1649 = vadd.f32 %v1648, %v1601
        %v1650 = vadd.f32 %v1649, %v1604
        %v1651 = vadd.f32 %v1650, %v1607
        %v1652 = vadd.f32 %v1651, %v1610
        %v1653 = vadd.f32 %v1652, %v1613
        %v1654 = vadd.f32 %v1653, %v1616
        %v1655 = vrot.slane %v1654, 4
        %v1656 = vadd.f32 %v1654, %v1655
        %v1657 = vrot.slane %v1656, 2
        %v1658 = vadd.f32 %v1656, %v1657
        %v1659 = vrot.slane %v1658, 1
        %v1660 = vadd.f32 %v1658, %v1659
        %v1661 = vadd.f32 %v1639, %v1660
        %1662 = vst [vmem:[%s342] sm:$0x1] %v1661
        %v1663 = vld [vmem:[%s342 + $0x1] sm:$0x1]
        %v1664 = vmul.f32 %v1571, %v1571
        %v1665 = vmul.f32 %v1574, %v1574
        %v1666 = vmul.f32 %v1577, %v1577
        %v1667 = vmul.f32 %v1580, %v1580
        %v1668 = vmul.f32 %v1583, %v1583
        %v1669 = vmul.f32 %v1586, %v1586
        %v1670 = vmul.f32 %v1589, %v1589
        %v1671 = vmul.f32 %v1592, %v1592
        %v1672 = vmul.f32 %v1595, %v1595
        %v1673 = vmul.f32 %v1598, %v1598
        %v1674 = vmul.f32 %v1601, %v1601
        %v1675 = vmul.f32 %v1604, %v1604
        %v1676 = vmul.f32 %v1607, %v1607
        %v1677 = vmul.f32 %v1610, %v1610
        %v1678 = vmul.f32 %v1613, %v1613
        %v1679 = vmul.f32 %v1616, %v1616
        %v1680 = vadd.f32 %v1664, %v1665
        %v1681 = vadd.f32 %v1680, %v1666
        %v1682 = vadd.f32 %v1681, %v1667
        %v1683 = vadd.f32 %v1682, %v1668
        %v1684 = vadd.f32 %v1683, %v1669
        %v1685 = vadd.f32 %v1684, %v1670
        %v1686 = vadd.f32 %v1685, %v1671
        %v1687 = vadd.f32 %v1686, %v1672
        %v1688 = vadd.f32 %v1687, %v1673
        %v1689 = vadd.f32 %v1688, %v1674
        %v1690 = vadd.f32 %v1689, %v1675
        %v1691 = vadd.f32 %v1690, %v1676
        %v1692 = vadd.f32 %v1691, %v1677
        %v1693 = vadd.f32 %v1692, %v1678
        %v1694 = vadd.f32 %v1693, %v1679
        %v1695 = vrot.slane %v1694, 4
        %v1696 = vadd.f32 %v1694, %v1695
        %v1697 = vrot.slane %v1696, 2
        %v1698 = vadd.f32 %v1696, %v1697
        %v1699 = vrot.slane %v1698, 1
        %v1700 = vadd.f32 %v1698, %v1699
        %v1701 = vadd.f32 %v1663, %v1700
        %1702 = vst [vmem:[%s342 + $0x1] sm:$0x1] %v1701
        %s1703 = sand.u32 %s160, 1
        %s1704 = scalar_lea.sflag [#allocation5], %s1703
        %s1705 = sand.u32 %s160, 1
        %s1706 = smul.addr %s1705, 128
        %s1707 = scalar_lea.vmem [#allocation4], %s1706
        %s1708 = sand.u32 %s186, 1
        %s1709 = scalar_lea.sflag [#allocation7], %s1708
        %s1710 = sand.u32 %s186, 1
        %s1711 = smul.addr %s1710, 8
        %s1712 = scalar_lea.vmem [#allocation6], %s1711
        // Predicated region
        $region41: #{tpu_custom_call.1} parent=35 // pred_check
          %p1713 = pneg %p170
        $region42: #{tpu_custom_call.1} parent=35 // pred_check_branch
          %1715 = sbr.rel (%p1713) target = $region44
        $region43: #{tpu_custom_call.1} parent=35 // pred_region
          %s1716 = smul.u32 %s27, 2
          %s1717 = sadd.s32 %s1716, %s28
          %s1718 = smul.u32 16, %s1717
          %1720 = vsyncadd %s1704, 0
          %s1721 = smul.addr %s1718, 8
          %s1722 = scalar_lea.hbm %s4, %s1721
          %s1723 = sshll.u32 %s1707, 4
          %s1724 = int_to_ptr.vmem [resolvable:$true] %s1723
          %s1725 = sshll.u32 %s1722, 4
          %s1726 = int_to_ptr.hbm [resolvable:$true] %s1725
          %1731 = dma.vmem_to_hbm [thread:$0]  %s1724, 2048, %s1726, %s1704, 128, 128, 8
        $region44: #{tpu_custom_call.1} parent=35 // pred_fallthru
          _
        // Predicated region
        $region45: #{tpu_custom_call.1} parent=35 // pred_check
          %p1732 = pneg %p196
        $region46: #{tpu_custom_call.1} parent=35 // pred_check_branch
          %1734 = sbr.rel (%p1732) target = $region48
        $region47: #{tpu_custom_call.1} parent=35 // pred_region
          %1736 = vsyncadd %s1709, 0
          %s1737 = smul.addr %s27, 8
          %s1738 = scalar_lea.hbm %s5, %s1737
          %s1740 = sshll.u32 %s1712, 4
          %s1741 = int_to_ptr.vmem [resolvable:$true] %s1740
          %s1742 = sshll.u32 %s1738, 4
          %s1743 = int_to_ptr.hbm [resolvable:$true] %s1742
          %1745 = dma.vmem_to_hbm [thread:$0]  %s1741, 128, %s1743, %s1709
        $region48: #{tpu_custom_call.1} parent=35 // pred_fallthru
          _
      $region36: #{tpu_custom_call.1} parent=5 // pred_fallthru
        _
      %p1746 = scmp.le.s32.totalorder 2, %s18
      // Predicated region
      $region49: #{tpu_custom_call.1} parent=5 // pred_check
        %p1747 = pneg %p1746
      $region50: #{tpu_custom_call.1} parent=5 // pred_check_branch
        %1749 = sbr.rel (%p1747) target = $region52
      $region51: #{tpu_custom_call.1} parent=5 // pred_region
        %s1750 = ssub.s32 %s18, 2
        // Predicated region
        $region53: #{tpu_custom_call.1} parent=51 // pred_check
          %p1751 = pneg %p176
        $region54: #{tpu_custom_call.1} parent=51 // pred_check_branch
          %1753 = sbr.rel (%p1751) target = $region56
        $region55: #{tpu_custom_call.1} parent=51 // pred_region
          %s1754 = sand.u32 %s161, 1
          %s1755 = scalar_lea.sflag [#allocation5], %s1754
          %s1756 = sand.u32 %s161, 1
          %s1757 = smul.addr %s1756, 128
          %s1758 = scalar_lea.vmem [#allocation4], %s1757
          %1760 = dma.done %s1755, 2048
        $region56: #{tpu_custom_call.1} parent=51 // pred_fallthru
          _
        // Predicated region
        $region57: #{tpu_custom_call.1} parent=51 // pred_check
          %p1761 = pneg %p202
        $region58: #{tpu_custom_call.1} parent=51 // pred_check_branch
          %1763 = sbr.rel (%p1761) target = $region60
        $region59: #{tpu_custom_call.1} parent=51 // pred_region
          %s1764 = sand.u32 %s187, 1
          %s1765 = scalar_lea.sflag [#allocation7], %s1764
          %s1766 = sand.u32 %s187, 1
          %s1767 = smul.addr %s1766, 8
          %s1768 = scalar_lea.vmem [#allocation6], %s1767
          %1770 = dma.done %s1765, 128
        $region60: #{tpu_custom_call.1} parent=51 // pred_fallthru
          _
      $region52: #{tpu_custom_call.1} parent=5 // pred_fallthru
        _
    $region6: #{tpu_custom_call.1} parent=1 // loop_footer
      %s22 = sadd.s32 1, %s18
    $region7: #{tpu_custom_call.1} parent=1 // loop_footer_branch
      %17 = sbr.rel target = $region3
    $region8: #{tpu_custom_call.1} parent=1 // loop_exit
      _
    %1771 = vsyncpa [#allocation5], 1
    %s1772 = scalar_lea.sflag [#allocation5], 1
    %1773 = vsyncpa %s1772, 1
    %1774 = vsyncpa [#allocation7], 1
    %s1775 = scalar_lea.sflag [#allocation7], 1
    %1776 = vsyncpa %s1775, 1

</llo_original>
